<compile_context>
chip_gen: v7x
topology: tpu7x:2x2x1
jax: 0.10.0
libtpu: 0.0.40
codegen_flags: <defaults>
</compile_context>

<pallas_src>
import jax
import jax.numpy as jnp
from jax.experimental import pallas as pl
from jax.experimental.pallas import tpu as pltpu


_NEG = -1e30          # "no neighbour yet" sentinel (kept in f32)
_NEG_THRESH = -5e29   # below this => row had no neighbour -> 0 (torch_sparse reduce='max')


def _round_up(x, m):
    return ((x + m - 1) // m) * m


def _pad2(a, rows, cols):
    pr, pc = rows - a.shape[0], cols - a.shape[1]
    if pr == 0 and pc == 0:
        return a
    return jnp.pad(a, ((0, pr), (0, pc)))


# ----------------------------- Pallas kernels ------------------------------


def _root_linear_kernel(x_ref, wt_ref, b_ref, o_ref):
    # out = x @ W^T + b, with W pre-transposed to (Cin, Cout) in the wrapper.
    o_ref[...] = (
        jnp.dot(x_ref[...], wt_ref[...], preferred_element_type=jnp.float32)
        + b_ref[...]
    )


def _fused_dst_kernel(adj_ref, xs_ref, wrel_ref, xd_ref, wroot_ref, b_ref,
                      o_ref, agg_ref, acc_ref):
    # Grid: (dst tiles [parallel], relation r [arbitrary], src tiles k [arbitrary]).
    r = pl.program_id(1)
    k = pl.program_id(2)
    nr = pl.num_programs(1)
    nk = pl.num_programs(2)

    # First step for this dst tile: seed the VMEM-resident output accumulator
    # with the root linear term (x_dst @ W_root^T + b).
    @pl.when((r == 0) & (k == 0))
    def _():
        acc_ref[...] = (
            jnp.dot(xd_ref[...], wroot_ref[...],
                    preferred_element_type=jnp.float32)
            + b_ref[...]
        )

    # First src tile of each relation: reset the running-max accumulator.
    @pl.when(k == 0)
    def _():
        agg_ref[...] = jnp.full(agg_ref.shape, _NEG, dtype=agg_ref.dtype)

    # Running per-feature max over this (Tdst x Tsrc) adjacency block.
    # Static unroll over the (bounded, <=128) source tile; only 2-D (Tdst, Cin)
    # intermediates - no O(Ndst*Nsrc*Cin) broadcast.
    adj = adj_ref[0].astype(jnp.float32)      # (Tdst, Tsrc), f32 elementwise math
    xs = xs_ref[0]                            # (Tsrc, Cin) f32
    agg = agg_ref[...]                        # (Tdst, Cin) f32
    for s in range(adj.shape[1]):
        nbr = adj[:, s:s + 1] > 0.0           # (Tdst, 1)
        agg = jnp.maximum(agg, jnp.where(nbr, xs[s:s + 1, :], _NEG))
    agg_ref[...] = agg

    # Last src tile of this relation: empty rows -> 0, then one MXU matmul with
    # the pre-transposed relation weight, accumulated in f32.
    @pl.when(k == nk - 1)
    def _():
        agg_full = agg_ref[...]
        agg_fin = jnp.where(agg_full > _NEG_THRESH, agg_full, 0.0)
        acc_ref[...] += jnp.dot(agg_fin, wrel_ref[0],
                                preferred_element_type=jnp.float32)

    # Very last step for this dst tile: single lane-dense output write.
    @pl.when((r == nr - 1) & (k == nk - 1))
    def _():
        o_ref[...] = acc_ref[...]


# ------------------------------ JAX wrappers --------------------------------


def root_linear(x, w, b):
    """x: (N, Cin), w: (Cout, Cin), b: (Cout,) -> (N, Cout) f32."""
    n, cin = x.shape
    cout = w.shape[0]
    cin_p = _round_up(cin, 128)
    cout_p = _round_up(cout, 128)
    tm = min(128, _round_up(n, 8))
    n_p = _round_up(n, tm)

    xp = _pad2(x.astype(jnp.float32), n_p, cin_p)
    wt = _pad2(w.astype(jnp.float32).T, cin_p, cout_p)        # (Cin, Cout), pre-transposed
    bp = _pad2(b.astype(jnp.float32).reshape(1, cout), 1, cout_p)

    out = pl.pallas_call(
        _root_linear_kernel,
        out_shape=jax.ShapeDtypeStruct((n_p, cout_p), jnp.float32),
        grid=(n_p // tm,),
        in_specs=[
            pl.BlockSpec((tm, cin_p), lambda i: (i, 0)),
            pl.BlockSpec((cin_p, cout_p), lambda i: (0, 0)),
            pl.BlockSpec((1, cout_p), lambda i: (0, 0)),
        ],
        out_specs=pl.BlockSpec((tm, cout_p), lambda i: (i, 0)),
        compiler_params=pltpu.CompilerParams(dimension_semantics=("parallel",)),
    )(xp, wt, bp)
    return out[:n, :cout]


def fused_rgcn_dst(x_dst, w_root, b_root, adj_list, x_src_list, w_rel_list):
    """Fused root linear + all relation (max-aggregate + linear) updates for one
    destination node type.  adj_list[r]: (Ndst, Nsrc_r) dense 0/1 mask."""
    ndst, cin = x_dst.shape
    cout = w_root.shape[0]
    num_rel = len(adj_list)

    cin_p = _round_up(cin, 128)
    cout_p = _round_up(cout, 128)
    tdst = min(128, _round_up(ndst, 8))
    ndst_p = _round_up(ndst, tdst)
    nsrc_max = max(a.shape[1] for a in adj_list)
    tsrc = min(128, _round_up(nsrc_max, 8))
    nsrc_p = _round_up(nsrc_max, tsrc)

    # Pad + stack per-relation inputs (zero-padded adj columns/rows are inert).
    adj_stack = jnp.stack(
        [_pad2(a.astype(jnp.bfloat16), ndst_p, nsrc_p) for a in adj_list])
    xsrc_stack = jnp.stack(
        [_pad2(x.astype(jnp.float32), nsrc_p, cin_p) for x in x_src_list])
    wrelt_stack = jnp.stack(
        [_pad2(w.astype(jnp.float32).T, cin_p, cout_p) for w in w_rel_list])
    xd = _pad2(x_dst.astype(jnp.float32), ndst_p, cin_p)
    wroott = _pad2(w_root.astype(jnp.float32).T, cin_p, cout_p)
    bp = _pad2(b_root.astype(jnp.float32).reshape(1, cout), 1, cout_p)

    grid = (ndst_p // tdst, num_rel, nsrc_p // tsrc)

    out = pl.pallas_call(
        _fused_dst_kernel,
        out_shape=jax.ShapeDtypeStruct((ndst_p, cout_p), jnp.float32),
        grid=grid,
        in_specs=[
            pl.BlockSpec((1, tdst, tsrc), lambda i, r, k: (r, i, k)),      # adj
            pl.BlockSpec((1, tsrc, cin_p), lambda i, r, k: (r, k, 0)),     # x_src
            pl.BlockSpec((1, cin_p, cout_p), lambda i, r, k: (r, 0, 0)),   # W_rel^T
            pl.BlockSpec((tdst, cin_p), lambda i, r, k: (i, 0)),           # x_dst
            pl.BlockSpec((cin_p, cout_p), lambda i, r, k: (0, 0)),         # W_root^T
            pl.BlockSpec((1, cout_p), lambda i, r, k: (0, 0)),             # b_root
        ],
        out_specs=pl.BlockSpec((tdst, cout_p), lambda i, r, k: (i, 0)),
        scratch_shapes=[
            pltpu.VMEM((tdst, cin_p), jnp.float32),    # running max accumulator
            pltpu.VMEM((tdst, cout_p), jnp.float32),   # output accumulator
        ],
        compiler_params=pltpu.CompilerParams(
            dimension_semantics=("parallel", "arbitrary", "arbitrary")),
    )(adj_stack, xsrc_stack, wrelt_stack, xd, wroott, bp)
    return out[:ndst, :cout]


class RGCNConv:
    """JAX/Pallas re-implementation of the PyTorch RGCNConv forward pass."""

    def __init__(self, in_channels, out_channels, node_types, edge_types, key):
        self.in_channels = in_channels
        self.out_channels = out_channels
        self.node_types = list(node_types)
        self.edge_types = [tuple(e) for e in edge_types]

        bound = 1.0 / jnp.sqrt(jnp.float32(in_channels))
        self.rel_w = {}
        self.root_w = {}
        self.root_b = {}
        for et in self.edge_types:
            key, sub = jax.random.split(key)
            name = f"{et[0]}_{et[1]}_{et[2]}"
            self.rel_w[name] = jax.random.uniform(
                sub, (out_channels, in_channels), jnp.float32, -bound, bound)
        for nt in self.node_types:
            key, k1, k2 = jax.random.split(key, 3)
            self.root_w[nt] = jax.random.uniform(
                k1, (out_channels, in_channels), jnp.float32, -bound, bound)
            self.root_b[nt] = jax.random.uniform(
                k2, (out_channels,), jnp.float32, -bound, bound)

    def __call__(self, x_dict, adj_t_dict):
        # Group incoming relations by destination node type (keeps the output
        # accumulator VMEM-resident across all of them in one pallas_call).
        rels_by_dst = {}
        for et, adj in adj_t_dict.items():
            rels_by_dst.setdefault(et[2], []).append((tuple(et), adj))

        out_dict = {}
        for nt, x in x_dict.items():
            rels = rels_by_dst.get(nt, [])
            if not rels:
                out_dict[nt] = root_linear(x, self.root_w[nt], self.root_b[nt])
            else:
                adj_list = [adj for (_, adj) in rels]
                xsrc_list = [x_dict[et[0]] for (et, _) in rels]
                wrel_list = [self.rel_w[f"{et[0]}_{et[1]}_{et[2]}"] for (et, _) in rels]
                out_dict[nt] = fused_rgcn_dst(
                    x, self.root_w[nt], self.root_b[nt],
                    adj_list, xsrc_list, wrel_list)
        return out_dict


# ------------------------------ pure-JAX reference ---------------------------


def _reference_forward(conv, x_dict, adj_t_dict):
    out = {}
    for nt, x in x_dict.items():
        out[nt] = (jnp.dot(x, conv.root_w[nt].T, precision="highest")
                   + conv.root_b[nt])
    for et, adj in adj_t_dict.items():
        src, rel, dst = et
        x = x_dict[src]
        masked = jnp.where(adj[:, :, None] > 0, x[None, :, :], -jnp.inf)
        agg = jnp.max(masked, axis=1)
        agg = jnp.where(jnp.sum(adj, axis=1, keepdims=True) > 0, agg, 0.0)
        w = conv.rel_w[f"{src}_{rel}_{dst}"]
        out[dst] = out[dst] + jnp.dot(agg, w.T, precision="highest")
    return out


# --------------------------------- demo -------------------------------------

if __name__ == "__main__":
    in_channels = 32
    out_channels = 32
    node_types = ["paper", "author"]
    edge_types = [("author", "writes", "paper"), ("paper", "cites", "paper")]
    num_nodes = {"paper": 16, "author": 8}

    key = jax.random.PRNGKey(0)
    key, kp, ka, k_adj1, k_adj2, k_params = jax.random.split(key, 6)

    x_dict = {
        "paper": jax.random.normal(kp, (num_nodes["paper"], in_channels), jnp.float32),
        "author": jax.random.normal(ka, (num_nodes["author"], in_channels), jnp.float32),
    }

    # Dense adj_t masks: adj[i, j] = 1 iff edge j(src) -> i(dst).
    adj_t_dict = {
        ("author", "writes", "paper"): (
            jax.random.uniform(k_adj1, (num_nodes["paper"], num_nodes["author"])) < 0.3
        ).astype(jnp.float32),
        ("paper", "cites", "paper"): (
            jax.random.uniform(k_adj2, (num_nodes["paper"], num_nodes["paper"])) < 0.2
        ).astype(jnp.float32),
    }

    conv = RGCNConv(in_channels, out_channels, node_types, edge_types, k_params)
    out_dict = conv(x_dict, adj_t_dict)
    for v in out_dict.values():
        jax.block_until_ready(v)

    assert out_dict["paper"].shape == (num_nodes["paper"], out_channels)
    assert out_dict["author"].shape == (num_nodes["author"], out_channels)

    # Correctness check against a pure-JAX reference of the PyTorch semantics.
    ref = _reference_forward(conv, x_dict, adj_t_dict)
    for nt in node_types:
        err = float(jnp.max(jnp.abs(out_dict[nt] - ref[nt])))
        assert err < 1e-2, f"mismatch for {nt}: max abs err {err}"

    print("KERNEL_OK")
</pallas_src>

<mosaic_0001>
module attributes {stable_mosaic.version = 11 : i64} {
  func.func @_fused_dst_kernel(%arg0: i32, %arg1: i32, %arg2: i32, %arg3: memref<1x16x16xbf16, #tpu.memory_space<vmem>>, %arg4: memref<1x16x128xf32, #tpu.memory_space<vmem>>, %arg5: memref<1x128x128xf32, #tpu.memory_space<vmem>>, %arg6: memref<16x128xf32, #tpu.memory_space<vmem>>, %arg7: memref<128x128xf32, #tpu.memory_space<vmem>>, %arg8: memref<1x128xf32, #tpu.memory_space<vmem>>, %arg9: memref<16x128xf32, #tpu.memory_space<vmem>>, %arg10: memref<16x128xf32, #tpu.memory_space<vmem>>, %arg11: memref<16x128xf32, #tpu.memory_space<vmem>>) attributes {dimension_semantics = [#tpu.dimension_semantics<parallel>, #tpu.dimension_semantics<arbitrary>, #tpu.dimension_semantics<arbitrary>], iteration_bounds = array<i64: 1, 2, 1>, scalar_prefetch = 0 : i64, scratch_operands = 2 : i64, tpu.core_type = #tpu.core_type<tc>, window_params = [{transform_indices = @transform_0, window_bounds = array<i64: 1, 16, 16>}, {transform_indices = @transform_1, window_bounds = array<i64: 1, 16, 128>}, {transform_indices = @transform_2, window_bounds = array<i64: 1, 128, 128>}, {transform_indices = @transform_3, window_bounds = array<i64: 16, 128>}, {pipeline_mode = #tpu.pipeline_mode<synchronous>, transform_indices = @transform_4, window_bounds = array<i64: 128, 128>}, {pipeline_mode = #tpu.pipeline_mode<synchronous>, transform_indices = @transform_5, window_bounds = array<i64: 1, 128>}, {transform_indices = @transform_6, window_bounds = array<i64: 16, 128>}]} {
    %c0_i32 = arith.constant 0 : i32
    %0 = arith.cmpi eq, %arg1, %c0_i32 : i32
    %c0_i32_0 = arith.constant 0 : i32
    %1 = arith.cmpi eq, %arg2, %c0_i32_0 : i32
    %2 = arith.andi %0, %1 : i1
    %3 = arith.extui %2 : i1 to i32
    %c0_i32_1 = arith.constant 0 : i32
    %4 = arith.cmpi ne, %3, %c0_i32_1 : i32
    scf.if %4 {
      %c0_48 = arith.constant 0 : index
      %c0_49 = arith.constant 0 : index
      %199 = vector.load %arg6[%c0_48, %c0_49] : memref<16x128xf32, #tpu.memory_space<vmem>>, vector<16x128xf32>
      %c0_50 = arith.constant 0 : index
      %c0_51 = arith.constant 0 : index
      %200 = vector.load %arg7[%c0_50, %c0_51] : memref<128x128xf32, #tpu.memory_space<vmem>>, vector<128x128xf32>
      %cst_52 = arith.constant dense<0.000000e+00> : vector<16x128xf32>
      %201 = tpu.matmul %199, %200, %cst_52 {dimension_numbers = #tpu.dot_dimension_numbers<[1], [0], [0], [1], [0, 0, 1, 1], [], []>} : vector<16x128xf32>, vector<128x128xf32>, vector<16x128xf32> -> vector<16x128xf32>
      %c0_53 = arith.constant 0 : index
      %c0_54 = arith.constant 0 : index
      %202 = vector.load %arg8[%c0_53, %c0_54] : memref<1x128xf32, #tpu.memory_space<vmem>>, vector<1x128xf32>
      %203 = vector.broadcast %202 : vector<1x128xf32> to vector<16x128xf32>
      %204 = arith.addf %201, %203 : vector<16x128xf32>
      %c0_55 = arith.constant 0 : index
      %c0_56 = arith.constant 0 : index
      %205 = vector.load %arg11[%c0_55, %c0_56] : memref<16x128xf32, #tpu.memory_space<vmem>>, vector<16x128xf32>
      tpu.vector_store %arg11[%c0_55, %c0_56], %204 {strides = array<i32>} : memref<16x128xf32, #tpu.memory_space<vmem>>, vector<16x128xf32>,
    } else {
    }
    %c0_i32_2 = arith.constant 0 : i32
    %5 = arith.cmpi eq, %arg2, %c0_i32_2 : i32
    %6 = arith.extui %5 : i1 to i32
    %c0_i32_3 = arith.constant 0 : i32
    %7 = arith.cmpi ne, %6, %c0_i32_3 : i32
    scf.if %7 {
      %cst_48 = arith.constant -1.000000e+30 : f32
      %199 = vector.broadcast %cst_48 : f32 to vector<16x128xf32>
      %c0_49 = arith.constant 0 : index
      %c0_50 = arith.constant 0 : index
      %200 = vector.load %arg10[%c0_49, %c0_50] : memref<16x128xf32, #tpu.memory_space<vmem>>, vector<16x128xf32>
      tpu.vector_store %arg10[%c0_49, %c0_50], %199 {strides = array<i32>} : memref<16x128xf32, #tpu.memory_space<vmem>>, vector<16x128xf32>,
    } else {
    }
    %c0 = arith.constant 0 : index
    %c0_4 = arith.constant 0 : index
    %c0_5 = arith.constant 0 : index
    %8 = vector.load %arg3[%c0, %c0_4, %c0_5] : memref<1x16x16xbf16, #tpu.memory_space<vmem>>, vector<1x16x16xbf16>
    %9 = vector.shape_cast %8 : vector<1x16x16xbf16> to vector<16x16xbf16>
    %10 = arith.extf %9 : vector<16x16xbf16> to vector<16x16xf32>
    %c0_6 = arith.constant 0 : index
    %c0_7 = arith.constant 0 : index
    %c0_8 = arith.constant 0 : index
    %11 = vector.load %arg4[%c0_6, %c0_7, %c0_8] : memref<1x16x128xf32, #tpu.memory_space<vmem>>, vector<1x16x128xf32>
    %12 = vector.shape_cast %11 : vector<1x16x128xf32> to vector<16x128xf32>
    %c0_9 = arith.constant 0 : index
    %c0_10 = arith.constant 0 : index
    %13 = vector.load %arg10[%c0_9, %c0_10] : memref<16x128xf32, #tpu.memory_space<vmem>>, vector<16x128xf32>
    %14 = vector.extract_strided_slice %10 {offsets = [0, 0], sizes = [16, 1], strides = [1, 1]} : vector<16x16xf32> to vector<16x1xf32>
    %cst = arith.constant 0.000000e+00 : f32
    %15 = vector.broadcast %cst : f32 to vector<16x1xf32>
    %16 = arith.cmpf ogt, %14, %15 : vector<16x1xf32>
    %17 = vector.extract_strided_slice %12 {offsets = [0, 0], sizes = [1, 128], strides = [1, 1]} : vector<16x128xf32> to vector<1x128xf32>
    %cst_11 = arith.constant -1.000000e+30 : f32
    %18 = vector.shape_cast %16 : vector<16x1xi1> to vector<16x1xi1>
    %19 = vector.broadcast %18 : vector<16x1xi1> to vector<16x128xi1>
    %20 = vector.shape_cast %17 : vector<1x128xf32> to vector<1x128xf32>
    %21 = vector.broadcast %20 : vector<1x128xf32> to vector<16x128xf32>
    %22 = vector.broadcast %cst_11 : f32 to vector<16x128xf32>
    %23 = arith.select %19, %21, %22 : vector<16x128xi1>, vector<16x128xf32>
    %24 = arith.maximumf %13, %23 : vector<16x128xf32>
    %25 = vector.extract_strided_slice %10 {offsets = [0, 1], sizes = [16, 1], strides = [1, 1]} : vector<16x16xf32> to vector<16x1xf32>
    %cst_12 = arith.constant 0.000000e+00 : f32
    %26 = vector.broadcast %cst_12 : f32 to vector<16x1xf32>
    %27 = arith.cmpf ogt, %25, %26 : vector<16x1xf32>
    %28 = vector.extract_strided_slice %12 {offsets = [1, 0], sizes = [1, 128], strides = [1, 1]} : vector<16x128xf32> to vector<1x128xf32>
    %cst_13 = arith.constant -1.000000e+30 : f32
    %29 = vector.shape_cast %27 : vector<16x1xi1> to vector<16x1xi1>
    %30 = vector.broadcast %29 : vector<16x1xi1> to vector<16x128xi1>
    %31 = vector.shape_cast %28 : vector<1x128xf32> to vector<1x128xf32>
    %32 = vector.broadcast %31 : vector<1x128xf32> to vector<16x128xf32>
    %33 = vector.broadcast %cst_13 : f32 to vector<16x128xf32>
    %34 = arith.select %30, %32, %33 : vector<16x128xi1>, vector<16x128xf32>
    %35 = arith.maximumf %24, %34 : vector<16x128xf32>
    %36 = vector.extract_strided_slice %10 {offsets = [0, 2], sizes = [16, 1], strides = [1, 1]} : vector<16x16xf32> to vector<16x1xf32>
    %cst_14 = arith.constant 0.000000e+00 : f32
    %37 = vector.broadcast %cst_14 : f32 to vector<16x1xf32>
    %38 = arith.cmpf ogt, %36, %37 : vector<16x1xf32>
    %39 = vector.extract_strided_slice %12 {offsets = [2, 0], sizes = [1, 128], strides = [1, 1]} : vector<16x128xf32> to vector<1x128xf32>
    %cst_15 = arith.constant -1.000000e+30 : f32
    %40 = vector.shape_cast %38 : vector<16x1xi1> to vector<16x1xi1>
    %41 = vector.broadcast %40 : vector<16x1xi1> to vector<16x128xi1>
    %42 = vector.shape_cast %39 : vector<1x128xf32> to vector<1x128xf32>
    %43 = vector.broadcast %42 : vector<1x128xf32> to vector<16x128xf32>
    %44 = vector.broadcast %cst_15 : f32 to vector<16x128xf32>
    %45 = arith.select %41, %43, %44 : vector<16x128xi1>, vector<16x128xf32>
    %46 = arith.maximumf %35, %45 : vector<16x128xf32>
    %47 = vector.extract_strided_slice %10 {offsets = [0, 3], sizes = [16, 1], strides = [1, 1]} : vector<16x16xf32> to vector<16x1xf32>
    %cst_16 = arith.constant 0.000000e+00 : f32
    %48 = vector.broadcast %cst_16 : f32 to vector<16x1xf32>
    %49 = arith.cmpf ogt, %47, %48 : vector<16x1xf32>
    %50 = vector.extract_strided_slice %12 {offsets = [3, 0], sizes = [1, 128], strides = [1, 1]} : vector<16x128xf32> to vector<1x128xf32>
    %cst_17 = arith.constant -1.000000e+30 : f32
    %51 = vector.shape_cast %49 : vector<16x1xi1> to vector<16x1xi1>
    %52 = vector.broadcast %51 : vector<16x1xi1> to vector<16x128xi1>
    %53 = vector.shape_cast %50 : vector<1x128xf32> to vector<1x128xf32>
    %54 = vector.broadcast %53 : vector<1x128xf32> to vector<16x128xf32>
    %55 = vector.broadcast %cst_17 : f32 to vector<16x128xf32>
    %56 = arith.select %52, %54, %55 : vector<16x128xi1>, vector<16x128xf32>
    %57 = arith.maximumf %46, %56 : vector<16x128xf32>
    %58 = vector.extract_strided_slice %10 {offsets = [0, 4], sizes = [16, 1], strides = [1, 1]} : vector<16x16xf32> to vector<16x1xf32>
    %cst_18 = arith.constant 0.000000e+00 : f32
    %59 = vector.broadcast %cst_18 : f32 to vector<16x1xf32>
    %60 = arith.cmpf ogt, %58, %59 : vector<16x1xf32>
    %61 = vector.extract_strided_slice %12 {offsets = [4, 0], sizes = [1, 128], strides = [1, 1]} : vector<16x128xf32> to vector<1x128xf32>
    %cst_19 = arith.constant -1.000000e+30 : f32
    %62 = vector.shape_cast %60 : vector<16x1xi1> to vector<16x1xi1>
    %63 = vector.broadcast %62 : vector<16x1xi1> to vector<16x128xi1>
    %64 = vector.shape_cast %61 : vector<1x128xf32> to vector<1x128xf32>
    %65 = vector.broadcast %64 : vector<1x128xf32> to vector<16x128xf32>
    %66 = vector.broadcast %cst_19 : f32 to vector<16x128xf32>
    %67 = arith.select %63, %65, %66 : vector<16x128xi1>, vector<16x128xf32>
    %68 = arith.maximumf %57, %67 : vector<16x128xf32>
    %69 = vector.extract_strided_slice %10 {offsets = [0, 5], sizes = [16, 1], strides = [1, 1]} : vector<16x16xf32> to vector<16x1xf32>
    %cst_20 = arith.constant 0.000000e+00 : f32
    %70 = vector.broadcast %cst_20 : f32 to vector<16x1xf32>
    %71 = arith.cmpf ogt, %69, %70 : vector<16x1xf32>
    %72 = vector.extract_strided_slice %12 {offsets = [5, 0], sizes = [1, 128], strides = [1, 1]} : vector<16x128xf32> to vector<1x128xf32>
    %cst_21 = arith.constant -1.000000e+30 : f32
    %73 = vector.shape_cast %71 : vector<16x1xi1> to vector<16x1xi1>
    %74 = vector.broadcast %73 : vector<16x1xi1> to vector<16x128xi1>
    %75 = vector.shape_cast %72 : vector<1x128xf32> to vector<1x128xf32>
    %76 = vector.broadcast %75 : vector<1x128xf32> to vector<16x128xf32>
    %77 = vector.broadcast %cst_21 : f32 to vector<16x128xf32>
    %78 = arith.select %74, %76, %77 : vector<16x128xi1>, vector<16x128xf32>
    %79 = arith.maximumf %68, %78 : vector<16x128xf32>
    %80 = vector.extract_strided_slice %10 {offsets = [0, 6], sizes = [16, 1], strides = [1, 1]} : vector<16x16xf32> to vector<16x1xf32>
    %cst_22 = arith.constant 0.000000e+00 : f32
    %81 = vector.broadcast %cst_22 : f32 to vector<16x1xf32>
    %82 = arith.cmpf ogt, %80, %81 : vector<16x1xf32>
    %83 = vector.extract_strided_slice %12 {offsets = [6, 0], sizes = [1, 128], strides = [1, 1]} : vector<16x128xf32> to vector<1x128xf32>
    %cst_23 = arith.constant -1.000000e+30 : f32
    %84 = vector.shape_cast %82 : vector<16x1xi1> to vector<16x1xi1>
    %85 = vector.broadcast %84 : vector<16x1xi1> to vector<16x128xi1>
    %86 = vector.shape_cast %83 : vector<1x128xf32> to vector<1x128xf32>
    %87 = vector.broadcast %86 : vector<1x128xf32> to vector<16x128xf32>
    %88 = vector.broadcast %cst_23 : f32 to vector<16x128xf32>
    %89 = arith.select %85, %87, %88 : vector<16x128xi1>, vector<16x128xf32>
    %90 = arith.maximumf %79, %89 : vector<16x128xf32>
    %91 = vector.extract_strided_slice %10 {offsets = [0, 7], sizes = [16, 1], strides = [1, 1]} : vector<16x16xf32> to vector<16x1xf32>
    %cst_24 = arith.constant 0.000000e+00 : f32
    %92 = vector.broadcast %cst_24 : f32 to vector<16x1xf32>
    %93 = arith.cmpf ogt, %91, %92 : vector<16x1xf32>
    %94 = vector.extract_strided_slice %12 {offsets = [7, 0], sizes = [1, 128], strides = [1, 1]} : vector<16x128xf32> to vector<1x128xf32>
    %cst_25 = arith.constant -1.000000e+30 : f32
    %95 = vector.shape_cast %93 : vector<16x1xi1> to vector<16x1xi1>
    %96 = vector.broadcast %95 : vector<16x1xi1> to vector<16x128xi1>
    %97 = vector.shape_cast %94 : vector<1x128xf32> to vector<1x128xf32>
    %98 = vector.broadcast %97 : vector<1x128xf32> to vector<16x128xf32>
    %99 = vector.broadcast %cst_25 : f32 to vector<16x128xf32>
    %100 = arith.select %96, %98, %99 : vector<16x128xi1>, vector<16x128xf32>
    %101 = arith.maximumf %90, %100 : vector<16x128xf32>
    %102 = vector.extract_strided_slice %10 {offsets = [0, 8], sizes = [16, 1], strides = [1, 1]} : vector<16x16xf32> to vector<16x1xf32>
    %cst_26 = arith.constant 0.000000e+00 : f32
    %103 = vector.broadcast %cst_26 : f32 to vector<16x1xf32>
    %104 = arith.cmpf ogt, %102, %103 : vector<16x1xf32>
    %105 = vector.extract_strided_slice %12 {offsets = [8, 0], sizes = [1, 128], strides = [1, 1]} : vector<16x128xf32> to vector<1x128xf32>
    %cst_27 = arith.constant -1.000000e+30 : f32
    %106 = vector.shape_cast %104 : vector<16x1xi1> to vector<16x1xi1>
    %107 = vector.broadcast %106 : vector<16x1xi1> to vector<16x128xi1>
    %108 = vector.shape_cast %105 : vector<1x128xf32> to vector<1x128xf32>
    %109 = vector.broadcast %108 : vector<1x128xf32> to vector<16x128xf32>
    %110 = vector.broadcast %cst_27 : f32 to vector<16x128xf32>
    %111 = arith.select %107, %109, %110 : vector<16x128xi1>, vector<16x128xf32>
    %112 = arith.maximumf %101, %111 : vector<16x128xf32>
    %113 = vector.extract_strided_slice %10 {offsets = [0, 9], sizes = [16, 1], strides = [1, 1]} : vector<16x16xf32> to vector<16x1xf32>
    %cst_28 = arith.constant 0.000000e+00 : f32
    %114 = vector.broadcast %cst_28 : f32 to vector<16x1xf32>
    %115 = arith.cmpf ogt, %113, %114 : vector<16x1xf32>
    %116 = vector.extract_strided_slice %12 {offsets = [9, 0], sizes = [1, 128], strides = [1, 1]} : vector<16x128xf32> to vector<1x128xf32>
    %cst_29 = arith.constant -1.000000e+30 : f32
    %117 = vector.shape_cast %115 : vector<16x1xi1> to vector<16x1xi1>
    %118 = vector.broadcast %117 : vector<16x1xi1> to vector<16x128xi1>
    %119 = vector.shape_cast %116 : vector<1x128xf32> to vector<1x128xf32>
    %120 = vector.broadcast %119 : vector<1x128xf32> to vector<16x128xf32>
    %121 = vector.broadcast %cst_29 : f32 to vector<16x128xf32>
    %122 = arith.select %118, %120, %121 : vector<16x128xi1>, vector<16x128xf32>
    %123 = arith.maximumf %112, %122 : vector<16x128xf32>
    %124 = vector.extract_strided_slice %10 {offsets = [0, 10], sizes = [16, 1], strides = [1, 1]} : vector<16x16xf32> to vector<16x1xf32>
    %cst_30 = arith.constant 0.000000e+00 : f32
    %125 = vector.broadcast %cst_30 : f32 to vector<16x1xf32>
    %126 = arith.cmpf ogt, %124, %125 : vector<16x1xf32>
    %127 = vector.extract_strided_slice %12 {offsets = [10, 0], sizes = [1, 128], strides = [1, 1]} : vector<16x128xf32> to vector<1x128xf32>
    %cst_31 = arith.constant -1.000000e+30 : f32
    %128 = vector.shape_cast %126 : vector<16x1xi1> to vector<16x1xi1>
    %129 = vector.broadcast %128 : vector<16x1xi1> to vector<16x128xi1>
    %130 = vector.shape_cast %127 : vector<1x128xf32> to vector<1x128xf32>
    %131 = vector.broadcast %130 : vector<1x128xf32> to vector<16x128xf32>
    %132 = vector.broadcast %cst_31 : f32 to vector<16x128xf32>
    %133 = arith.select %129, %131, %132 : vector<16x128xi1>, vector<16x128xf32>
    %134 = arith.maximumf %123, %133 : vector<16x128xf32>
    %135 = vector.extract_strided_slice %10 {offsets = [0, 11], sizes = [16, 1], strides = [1, 1]} : vector<16x16xf32> to vector<16x1xf32>
    %cst_32 = arith.constant 0.000000e+00 : f32
    %136 = vector.broadcast %cst_32 : f32 to vector<16x1xf32>
    %137 = arith.cmpf ogt, %135, %136 : vector<16x1xf32>
    %138 = vector.extract_strided_slice %12 {offsets = [11, 0], sizes = [1, 128], strides = [1, 1]} : vector<16x128xf32> to vector<1x128xf32>
    %cst_33 = arith.constant -1.000000e+30 : f32
    %139 = vector.shape_cast %137 : vector<16x1xi1> to vector<16x1xi1>
    %140 = vector.broadcast %139 : vector<16x1xi1> to vector<16x128xi1>
    %141 = vector.shape_cast %138 : vector<1x128xf32> to vector<1x128xf32>
    %142 = vector.broadcast %141 : vector<1x128xf32> to vector<16x128xf32>
    %143 = vector.broadcast %cst_33 : f32 to vector<16x128xf32>
    %144 = arith.select %140, %142, %143 : vector<16x128xi1>, vector<16x128xf32>
    %145 = arith.maximumf %134, %144 : vector<16x128xf32>
    %146 = vector.extract_strided_slice %10 {offsets = [0, 12], sizes = [16, 1], strides = [1, 1]} : vector<16x16xf32> to vector<16x1xf32>
    %cst_34 = arith.constant 0.000000e+00 : f32
    %147 = vector.broadcast %cst_34 : f32 to vector<16x1xf32>
    %148 = arith.cmpf ogt, %146, %147 : vector<16x1xf32>
    %149 = vector.extract_strided_slice %12 {offsets = [12, 0], sizes = [1, 128], strides = [1, 1]} : vector<16x128xf32> to vector<1x128xf32>
    %cst_35 = arith.constant -1.000000e+30 : f32
    %150 = vector.shape_cast %148 : vector<16x1xi1> to vector<16x1xi1>
    %151 = vector.broadcast %150 : vector<16x1xi1> to vector<16x128xi1>
    %152 = vector.shape_cast %149 : vector<1x128xf32> to vector<1x128xf32>
    %153 = vector.broadcast %152 : vector<1x128xf32> to vector<16x128xf32>
    %154 = vector.broadcast %cst_35 : f32 to vector<16x128xf32>
    %155 = arith.select %151, %153, %154 : vector<16x128xi1>, vector<16x128xf32>
    %156 = arith.maximumf %145, %155 : vector<16x128xf32>
    %157 = vector.extract_strided_slice %10 {offsets = [0, 13], sizes = [16, 1], strides = [1, 1]} : vector<16x16xf32> to vector<16x1xf32>
    %cst_36 = arith.constant 0.000000e+00 : f32
    %158 = vector.broadcast %cst_36 : f32 to vector<16x1xf32>
    %159 = arith.cmpf ogt, %157, %158 : vector<16x1xf32>
    %160 = vector.extract_strided_slice %12 {offsets = [13, 0], sizes = [1, 128], strides = [1, 1]} : vector<16x128xf32> to vector<1x128xf32>
    %cst_37 = arith.constant -1.000000e+30 : f32
    %161 = vector.shape_cast %159 : vector<16x1xi1> to vector<16x1xi1>
    %162 = vector.broadcast %161 : vector<16x1xi1> to vector<16x128xi1>
    %163 = vector.shape_cast %160 : vector<1x128xf32> to vector<1x128xf32>
    %164 = vector.broadcast %163 : vector<1x128xf32> to vector<16x128xf32>
    %165 = vector.broadcast %cst_37 : f32 to vector<16x128xf32>
    %166 = arith.select %162, %164, %165 : vector<16x128xi1>, vector<16x128xf32>
    %167 = arith.maximumf %156, %166 : vector<16x128xf32>
    %168 = vector.extract_strided_slice %10 {offsets = [0, 14], sizes = [16, 1], strides = [1, 1]} : vector<16x16xf32> to vector<16x1xf32>
    %cst_38 = arith.constant 0.000000e+00 : f32
    %169 = vector.broadcast %cst_38 : f32 to vector<16x1xf32>
    %170 = arith.cmpf ogt, %168, %169 : vector<16x1xf32>
    %171 = vector.extract_strided_slice %12 {offsets = [14, 0], sizes = [1, 128], strides = [1, 1]} : vector<16x128xf32> to vector<1x128xf32>
    %cst_39 = arith.constant -1.000000e+30 : f32
    %172 = vector.shape_cast %170 : vector<16x1xi1> to vector<16x1xi1>
    %173 = vector.broadcast %172 : vector<16x1xi1> to vector<16x128xi1>
    %174 = vector.shape_cast %171 : vector<1x128xf32> to vector<1x128xf32>
    %175 = vector.broadcast %174 : vector<1x128xf32> to vector<16x128xf32>
    %176 = vector.broadcast %cst_39 : f32 to vector<16x128xf32>
    %177 = arith.select %173, %175, %176 : vector<16x128xi1>, vector<16x128xf32>
    %178 = arith.maximumf %167, %177 : vector<16x128xf32>
    %179 = vector.extract_strided_slice %10 {offsets = [0, 15], sizes = [16, 1], strides = [1, 1]} : vector<16x16xf32> to vector<16x1xf32>
    %cst_40 = arith.constant 0.000000e+00 : f32
    %180 = vector.broadcast %cst_40 : f32 to vector<16x1xf32>
    %181 = arith.cmpf ogt, %179, %180 : vector<16x1xf32>
    %182 = vector.extract_strided_slice %12 {offsets = [15, 0], sizes = [1, 128], strides = [1, 1]} : vector<16x128xf32> to vector<1x128xf32>
    %cst_41 = arith.constant -1.000000e+30 : f32
    %183 = vector.shape_cast %181 : vector<16x1xi1> to vector<16x1xi1>
    %184 = vector.broadcast %183 : vector<16x1xi1> to vector<16x128xi1>
    %185 = vector.shape_cast %182 : vector<1x128xf32> to vector<1x128xf32>
    %186 = vector.broadcast %185 : vector<1x128xf32> to vector<16x128xf32>
    %187 = vector.broadcast %cst_41 : f32 to vector<16x128xf32>
    %188 = arith.select %184, %186, %187 : vector<16x128xi1>, vector<16x128xf32>
    %189 = arith.maximumf %178, %188 : vector<16x128xf32>
    %c0_42 = arith.constant 0 : index
    %c0_43 = arith.constant 0 : index
    %190 = vector.load %arg10[%c0_42, %c0_43] : memref<16x128xf32, #tpu.memory_space<vmem>>, vector<16x128xf32>
    tpu.vector_store %arg10[%c0_42, %c0_43], %189 {strides = array<i32>} : memref<16x128xf32, #tpu.memory_space<vmem>>, vector<16x128xf32>,
    %c0_i32_44 = arith.constant 0 : i32
    %191 = arith.cmpi eq, %arg2, %c0_i32_44 : i32
    %192 = arith.extui %191 : i1 to i32
    %c0_i32_45 = arith.constant 0 : i32
    %193 = arith.cmpi ne, %192, %c0_i32_45 : i32
    scf.if %193 {
      %c0_48 = arith.constant 0 : index
      %c0_49 = arith.constant 0 : index
      %199 = vector.load %arg10[%c0_48, %c0_49] : memref<16x128xf32, #tpu.memory_space<vmem>>, vector<16x128xf32>
      %cst_50 = arith.constant -5.000000e+29 : f32
      %200 = vector.broadcast %cst_50 : f32 to vector<16x128xf32>
      %201 = arith.cmpf ogt, %199, %200 : vector<16x128xf32>
      %cst_51 = arith.constant 0.000000e+00 : f32
      %202 = vector.broadcast %cst_51 : f32 to vector<16x128xf32>
      %203 = arith.select %201, %199, %202 : vector<16x128xi1>, vector<16x128xf32>
      %c0_52 = arith.constant 0 : index
      %c0_53 = arith.constant 0 : index
      %204 = vector.load %arg11[%c0_52, %c0_53] : memref<16x128xf32, #tpu.memory_space<vmem>>, vector<16x128xf32>
      %c0_54 = arith.constant 0 : index
      %c0_55 = arith.constant 0 : index
      %c0_56 = arith.constant 0 : index
      %205 = vector.load %arg5[%c0_54, %c0_55, %c0_56] : memref<1x128x128xf32, #tpu.memory_space<vmem>>, vector<1x128x128xf32>
      %206 = vector.shape_cast %205 : vector<1x128x128xf32> to vector<128x128xf32>
      %cst_57 = arith.constant dense<0.000000e+00> : vector<16x128xf32>
      %207 = tpu.matmul %203, %206, %cst_57 {dimension_numbers = #tpu.dot_dimension_numbers<[1], [0], [0], [1], [0, 0, 1, 1], [], []>} : vector<16x128xf32>, vector<128x128xf32>, vector<16x128xf32> -> vector<16x128xf32>
      %208 = arith.addf %204, %207 : vector<16x128xf32>
      %c0_58 = arith.constant 0 : index
      %c0_59 = arith.constant 0 : index
      %209 = vector.load %arg11[%c0_58, %c0_59] : memref<16x128xf32, #tpu.memory_space<vmem>>, vector<16x128xf32>
      tpu.vector_store %arg11[%c0_58, %c0_59], %208 {strides = array<i32>} : memref<16x128xf32, #tpu.memory_space<vmem>>, vector<16x128xf32>,
    } else {
    }
    %c1_i32 = arith.constant 1 : i32
    %194 = arith.cmpi eq, %arg1, %c1_i32 : i32
    %c0_i32_46 = arith.constant 0 : i32
    %195 = arith.cmpi eq, %arg2, %c0_i32_46 : i32
    %196 = arith.andi %194, %195 : i1
    %197 = arith.extui %196 : i1 to i32
    %c0_i32_47 = arith.constant 0 : i32
    %198 = arith.cmpi ne, %197, %c0_i32_47 : i32
    scf.if %198 {
      %c0_48 = arith.constant 0 : index
      %c0_49 = arith.constant 0 : index
      %199 = vector.load %arg11[%c0_48, %c0_49] : memref<16x128xf32, #tpu.memory_space<vmem>>, vector<16x128xf32>
      %c0_50 = arith.constant 0 : index
      %c0_51 = arith.constant 0 : index
      %200 = vector.load %arg9[%c0_50, %c0_51] : memref<16x128xf32, #tpu.memory_space<vmem>>, vector<16x128xf32>
      tpu.vector_store %arg9[%c0_50, %c0_51], %199 {strides = array<i32>} : memref<16x128xf32, #tpu.memory_space<vmem>>, vector<16x128xf32>,
    } else {
    }
    return
  }
  func.func @transform_0(%arg0: i32, %arg1: i32, %arg2: i32) -> (i32, i32, i32) {
    %c0_i32 = arith.constant 0 : i32
    return %arg1, %arg0, %arg2 : i32, i32, i32
  }
  func.func @transform_1(%arg0: i32, %arg1: i32, %arg2: i32) -> (i32, i32, i32) {
    %c0_i32 = arith.constant 0 : i32
    %c0_i32_0 = arith.constant 0 : i32
    return %arg1, %arg2, %c0_i32 : i32, i32, i32
  }
  func.func @transform_2(%arg0: i32, %arg1: i32, %arg2: i32) -> (i32, i32, i32) {
    %c0_i32 = arith.constant 0 : i32
    %c0_i32_0 = arith.constant 0 : i32
    %c0_i32_1 = arith.constant 0 : i32
    return %arg1, %c0_i32, %c0_i32_0 : i32, i32, i32
  }
  func.func @transform_3(%arg0: i32, %arg1: i32, %arg2: i32) -> (i32, i32) {
    %c0_i32 = arith.constant 0 : i32
    %c0_i32_0 = arith.constant 0 : i32
    return %arg0, %c0_i32 : i32, i32
  }
  func.func @transform_4(%arg0: i32, %arg1: i32, %arg2: i32) -> (i32, i32) {
    %c0_i32 = arith.constant 0 : i32
    %c0_i32_0 = arith.constant 0 : i32
    %c0_i32_1 = arith.constant 0 : i32
    return %c0_i32, %c0_i32_0 : i32, i32
  }
  func.func @transform_5(%arg0: i32, %arg1: i32, %arg2: i32) -> (i32, i32) {
    %c0_i32 = arith.constant 0 : i32
    %c0_i32_0 = arith.constant 0 : i32
    %c0_i32_1 = arith.constant 0 : i32
    return %c0_i32, %c0_i32_0 : i32, i32
  }
  func.func @transform_6(%arg0: i32, %arg1: i32, %arg2: i32) -> (i32, i32) {
    %c0_i32 = arith.constant 0 : i32
    %c0_i32_0 = arith.constant 0 : i32
    return %arg0, %c0_i32 : i32, i32
  }
}

</mosaic_0001>

<llo_original>
// kernel: tpu_custom_call.1
$region0: #{tpu_custom_call.1}
  #allocation0 [shape = 'u32[]', space=smem, size = 0x4, offset = 0x4, fixed_abs, tag = 'smem constant byte address 0x4 - core index']
  #allocation1 [shape = 'u32[144,128]{1,0:T(1,128)}', space=vmem, size = 0x12000, scoped, tag = 'internal scratch']
  #allocation2 [shape = 'f32[16,128]{1,0:T(8,128)}', space=vmem, size = 0x2000, scoped, tag = 'scratch operand']
  #allocation3 [shape = 'f32[16,128]{1,0:T(8,128)}', space=vmem, size = 0x2000, scoped, tag = 'scratch operand']
  %s0 = inlined_call_operand.hbm [shape: bf16[2,16,16], index: 0, kind: input, shape index: {}]
  %s1 = inlined_call_operand.hbm [shape: f32[2,16,128], index: 1, kind: input, shape index: {}]
  %s2 = inlined_call_operand.hbm [shape: f32[2,128,128], index: 2, kind: input, shape index: {}]
  %s3 = inlined_call_operand.hbm [shape: f32[16,128], index: 3, kind: input, shape index: {}]
  %s4 = inlined_call_operand.hbm [shape: f32[128,128], index: 4, kind: input, shape index: {}]
  %s5 = inlined_call_operand.vmem [shape: f32[1,128], index: 5, kind: input, shape index: {}]
  %s6 = inlined_call_operand.hbm [shape: f32[16,128], index: 6, kind: output, shape index: {}]
  %s7 = sld [smem:[#allocation0]]
  $region93: #{tpu_custom_call.1} parent=0
    _
  %s9 = ssub.s32 1, %s7
  %s10 = scalar_select 0, %s9, %s7
  $region1: #{tpu_custom_call.1} parent=0
    #allocation4 [shape = 'u8[8192]{0}', space=vmem, size = 0x2000, scoped, tag = 'input window, operand 0']
    #allocation5 [shape = 's32[2]{0}', space=sflag, size = 0x8, scoped, tag = 'scoped memory for tpu_custom_call.1']
    #allocation6 [shape = 's32[2]{0}', space=sflag, size = 0x8, scoped, tag = 'scoped memory for tpu_custom_call.1']
    #allocation7 [shape = 'u8[16384]{0}', space=vmem, size = 0x4000, scoped, tag = 'input window, operand 1']
    #allocation8 [shape = 's32[2]{0}', space=sflag, size = 0x8, scoped, tag = 'scoped memory for tpu_custom_call.1']
    #allocation9 [shape = 'u8[131072]{0}', space=vmem, size = 0x20000, scoped, tag = 'input window, operand 2']
    #allocation10 [shape = 'u8[8192]{0}', space=vmem, size = 0x2000, scoped, tag = 'input window, operand 3, single buffered']
    #allocation11 [shape = 's32[1]{0}', space=sflag, size = 0x4, scoped, tag = 'scoped memory for tpu_custom_call.1']
    #allocation12 [shape = 'u8[65536]{0}', space=vmem, size = 0x10000, scoped, tag = 'input window, operand 4, single buffered']
    #allocation13 [shape = 'u8[8192]{0}', space=vmem, size = 0x2000, scoped, tag = 'output window, operand 0, single buffered']
    %11 = vsyncpa [#allocation5], 0
    %s12 = scalar_lea.sflag [#allocation5], 1
    %13 = vsyncpa %s12, 0
    %14 = vsyncpa [#allocation8], 0
    %s15 = scalar_lea.sflag [#allocation8], 1
    %16 = vsyncpa %s15, 0
    %17 = vsyncpa [#allocation11], 0
    %18 = vsyncpa [#allocation6], 0
    loop: start=0, step=1, limit=4
    $region2: #{tpu_custom_call.1} parent=1 // loop_pre_header
      _
    $region3: #{tpu_custom_call.1} parent=1 // loop_header
      %s20 = sphi 0, %s24
      %p21 = scmp.ge.s32.totalorder %s20, 4
      %s27 = sphi 0, %s46
      %s28 = sphi 0, %s42
      %s29 = sphi 0, %s38
      %s30 = sphi 0, %s27
      %s31 = sphi 0, %s28
      %s32 = sphi 0, %s29
      %s33 = sphi 0, %s30
      %s34 = sphi 0, %s31
      %s35 = sphi 0, %s32
      %s53 = sphi 0, %s55
      %s56 = sphi 0, %s53
      %s57 = sphi 0, %s56
      %s73 = sphi 0, %s57
      %s81 = sphi 0, %s83
      %s84 = sphi 0, %s81
      %s85 = sphi 0, %s84
      %s101 = sphi 0, %s85
      %s107 = sphi 0, %s109
      %s110 = sphi 0, %s107
      %s111 = sphi 0, %s110
      %s127 = sphi 0, %s111
      %s133 = sphi 0, %s135
      %s136 = sphi 0, %s133
      %s137 = sphi 0, %s136
      %s153 = sphi 0, %s137
      %s157 = sphi 0, %s157
      %s159 = sphi 0, %s157
      %s160 = sphi 0, %s159
      %s174 = sphi 0, %s160
      %s178 = sphi 0, %s178
      %s180 = sphi 0, %s178
      %s181 = sphi 0, %s180
      %s195 = sphi 0, %s181
      %s201 = sphi 0, %s203
      %s204 = sphi 0, %s201
      %s205 = sphi 0, %s204
      %s221 = sphi 0, %s205
    $region4: #{tpu_custom_call.1} parent=1 // loop_header_branch
      %23 = sbr.rel (%p21) target = $region8
    $region5: #{tpu_custom_call.1} parent=1 // loop_body
      %s25 = ssub.s32 %s20, 1
      %s26 = ssub.s32 %s20, 2
      %s36 = sadd.s32 1, %s29
      %p37 = scmp.ge.s32.totalorder %s36, 1
      %s38 = scalar_select %p37, 0, %s36
      %s39 = sadd.s32 1, %s28
      %s40 = scalar_select %p37, %s39, %s28
      %p41 = scmp.ge.s32.totalorder %s40, 2
      %s42 = scalar_select %p41, 0, %s40
      %s43 = sadd.s32 1, %s27
      %s44 = scalar_select %p41, %s43, %s27
      %p45 = scmp.ge.s32.totalorder %s44, 1
      %s46 = scalar_select %p45, 0, %s44
      %s47 = ssub.s32 %s28, %s42
      %s48 = ssub.s32 %s27, %s46
      %s49 = sor.u32 %s47, %s48
      %s50 = ssub.s32 %s29, %s38
      %s51 = sor.u32 %s49, %s50
      %p52 = scmp.eq.s32.totalorder %s51, 0
      %s54 = sadd.s32 %s53, 1
      %s55 = scalar_select %p52, %s53, %s54
      %p58 = pneg %p52
      %p59 = scmp.eq.s32.totalorder %s20, 1
      %p60 = por %p58, %p59
      %p61 = scmp.ne.s32.totalorder %s53, %s56
      %p62 = scmp.eq.s32.totalorder %s20, 0
      %p63 = por %p61, %p62
      %p64 = scmp.ne.s32.totalorder %s53, %s56
      %p65 = scmp.eq.s32.totalorder %s25, 1
      %p66 = por %p64, %p65
      %p67 = scmp.ne.s32.totalorder %s56, %s57
      %p68 = scmp.eq.s32.totalorder %s25, 0
      %p69 = por %p67, %p68
      %p70 = scmp.ne.s32.totalorder %s56, %s57
      %p71 = scmp.eq.s32.totalorder %s26, 1
      %p72 = por %p70, %p71
      %p74 = scmp.ne.s32.totalorder %s57, %s73
      %p75 = scmp.eq.s32.totalorder %s26, 0
      %p76 = por %p74, %p75
      %s77 = ssub.s32 %s28, %s42
      %s78 = ssub.s32 %s29, %s38
      %s79 = sor.u32 %s77, %s78
      %p80 = scmp.eq.s32.totalorder %s79, 0
      %s82 = sadd.s32 %s81, 1
      %s83 = scalar_select %p80, %s81, %s82
      %p86 = pneg %p80
      %p87 = scmp.eq.s32.totalorder %s20, 1
      %p88 = por %p86, %p87
      %p89 = scmp.ne.s32.totalorder %s81, %s84
      %p90 = scmp.eq.s32.totalorder %s20, 0
      %p91 = por %p89, %p90
      %p92 = scmp.ne.s32.totalorder %s81, %s84
      %p93 = scmp.eq.s32.totalorder %s25, 1
      %p94 = por %p92, %p93
      %p95 = scmp.ne.s32.totalorder %s84, %s85
      %p96 = scmp.eq.s32.totalorder %s25, 0
      %p97 = por %p95, %p96
      %p98 = scmp.ne.s32.totalorder %s84, %s85
      %p99 = scmp.eq.s32.totalorder %s26, 1
      %p100 = por %p98, %p99
      %p102 = scmp.ne.s32.totalorder %s85, %s101
      %p103 = scmp.eq.s32.totalorder %s26, 0
      %p104 = por %p102, %p103
      %s105 = ssub.s32 %s28, %s42
      %p106 = scmp.eq.s32.totalorder %s105, 0
      %s108 = sadd.s32 %s107, 1
      %s109 = scalar_select %p106, %s107, %s108
      %p112 = pneg %p106
      %p113 = scmp.eq.s32.totalorder %s20, 1
      %p114 = por %p112, %p113
      %p115 = scmp.ne.s32.totalorder %s107, %s110
      %p116 = scmp.eq.s32.totalorder %s20, 0
      %p117 = por %p115, %p116
      %p118 = scmp.ne.s32.totalorder %s107, %s110
      %p119 = scmp.eq.s32.totalorder %s25, 1
      %p120 = por %p118, %p119
      %p121 = scmp.ne.s32.totalorder %s110, %s111
      %p122 = scmp.eq.s32.totalorder %s25, 0
      %p123 = por %p121, %p122
      %p124 = scmp.ne.s32.totalorder %s110, %s111
      %p125 = scmp.eq.s32.totalorder %s26, 1
      %p126 = por %p124, %p125
      %p128 = scmp.ne.s32.totalorder %s111, %s127
      %p129 = scmp.eq.s32.totalorder %s26, 0
      %p130 = por %p128, %p129
      %s131 = ssub.s32 %s27, %s46
      %p132 = scmp.eq.s32.totalorder %s131, 0
      %s134 = sadd.s32 %s133, 1
      %s135 = scalar_select %p132, %s133, %s134
      %p138 = pneg %p132
      %p139 = scmp.eq.s32.totalorder %s20, 1
      %p140 = por %p138, %p139
      %p141 = scmp.ne.s32.totalorder %s133, %s136
      %p142 = scmp.eq.s32.totalorder %s20, 0
      %p143 = por %p141, %p142
      %p144 = scmp.ne.s32.totalorder %s133, %s136
      %p145 = scmp.eq.s32.totalorder %s25, 1
      %p146 = por %p144, %p145
      %p147 = scmp.ne.s32.totalorder %s136, %s137
      %p148 = scmp.eq.s32.totalorder %s25, 0
      %p149 = por %p147, %p148
      %p150 = scmp.ne.s32.totalorder %s136, %s137
      %p151 = scmp.eq.s32.totalorder %s26, 1
      %p152 = por %p150, %p151
      %p154 = scmp.ne.s32.totalorder %s137, %s153
      %p155 = scmp.eq.s32.totalorder %s26, 0
      %p156 = por %p154, %p155
      %s158 = sadd.s32 %s157, 1
      %p161 = scmp.eq.s32.totalorder %s20, 1
      %p162 = scmp.ne.s32.totalorder %s157, %s159
      %p163 = scmp.eq.s32.totalorder %s20, 0
      %p164 = por %p162, %p163
      %p165 = scmp.ne.s32.totalorder %s157, %s159
      %p166 = scmp.eq.s32.totalorder %s25, 1
      %p167 = por %p165, %p166
      %p168 = scmp.ne.s32.totalorder %s159, %s160
      %p169 = scmp.eq.s32.totalorder %s25, 0
      %p170 = por %p168, %p169
      %p171 = scmp.ne.s32.totalorder %s159, %s160
      %p172 = scmp.eq.s32.totalorder %s26, 1
      %p173 = por %p171, %p172
      %p175 = scmp.ne.s32.totalorder %s160, %s174
      %p176 = scmp.eq.s32.totalorder %s26, 0
      %p177 = por %p175, %p176
      %s179 = sadd.s32 %s178, 1
      %p182 = scmp.eq.s32.totalorder %s20, 1
      %p183 = scmp.ne.s32.totalorder %s178, %s180
      %p184 = scmp.eq.s32.totalorder %s20, 0
      %p185 = por %p183, %p184
      %p186 = scmp.ne.s32.totalorder %s178, %s180
      %p187 = scmp.eq.s32.totalorder %s25, 1
      %p188 = por %p186, %p187
      %p189 = scmp.ne.s32.totalorder %s180, %s181
      %p190 = scmp.eq.s32.totalorder %s25, 0
      %p191 = por %p189, %p190
      %p192 = scmp.ne.s32.totalorder %s180, %s181
      %p193 = scmp.eq.s32.totalorder %s26, 1
      %p194 = por %p192, %p193
      %p196 = scmp.ne.s32.totalorder %s181, %s195
      %p197 = scmp.eq.s32.totalorder %s26, 0
      %p198 = por %p196, %p197
      %s199 = ssub.s32 %s27, %s46
      %p200 = scmp.eq.s32.totalorder %s199, 0
      %s202 = sadd.s32 %s201, 1
      %s203 = scalar_select %p200, %s201, %s202
      %p206 = pneg %p200
      %p207 = scmp.eq.s32.totalorder %s20, 1
      %p208 = por %p206, %p207
      %p209 = scmp.ne.s32.totalorder %s201, %s204
      %p210 = scmp.eq.s32.totalorder %s20, 0
      %p211 = por %p209, %p210
      %p212 = scmp.ne.s32.totalorder %s201, %s204
      %p213 = scmp.eq.s32.totalorder %s25, 1
      %p214 = por %p212, %p213
      %p215 = scmp.ne.s32.totalorder %s204, %s205
      %p216 = scmp.eq.s32.totalorder %s25, 0
      %p217 = por %p215, %p216
      %p218 = scmp.ne.s32.totalorder %s204, %s205
      %p219 = scmp.eq.s32.totalorder %s26, 1
      %p220 = por %p218, %p219
      %p222 = scmp.ne.s32.totalorder %s205, %s221
      %p223 = scmp.eq.s32.totalorder %s26, 0
      %p224 = por %p222, %p223
      %p225 = scmp.le.s32.totalorder 1, %s20
      %p226 = scmp.lt.s32.totalorder %s20, 3
      %p227 = pnand %p225, %p226
      %p228 = pneg %p227
      // Predicated region
      $region9: #{tpu_custom_call.1} parent=5 // pred_check
        _
      $region10: #{tpu_custom_call.1} parent=5 // pred_check_branch
        %230 = sbr.rel (%p227) target = $region12
      $region11: #{tpu_custom_call.1} parent=5 // pred_region
        %s231 = ssub.s32 %s20, 1
        // Predicated region
        $region13: #{tpu_custom_call.1} parent=11 // pred_check
          %p232 = pneg %p149
        $region14: #{tpu_custom_call.1} parent=11 // pred_check_branch
          %234 = sbr.rel (%p232) target = $region16
        $region15: #{tpu_custom_call.1} parent=11 // pred_region
          %s235 = smul.u32 2, %s30
          %s237 = ssub.s32 256, 256
          %238 = vsyncadd [#allocation11], %s237
          %s239 = smul.addr %s235, 128
          %s240 = scalar_lea.hbm %s3, %s239
          %s241 = sshll.u32 [#allocation10], 4
          %s242 = int_to_ptr.vmem [resolvable:$true] %s241
          %247 = dma.hbm_to_vmem [thread:$0]  %s240, 256, %s242, [#allocation11], 128, 128, 8
        $region16: #{tpu_custom_call.1} parent=11 // pred_fallthru
          _
        // Predicated region
        $region17: #{tpu_custom_call.1} parent=11 // pred_check
          %p248 = pneg %p170
        $region18: #{tpu_custom_call.1} parent=11 // pred_check_branch
          %250 = sbr.rel (%p248) target = $region20
        $region19: #{tpu_custom_call.1} parent=11 // pred_region
          %s252 = ssub.s32 2048, 2048
          %253 = vsyncadd [#allocation11], %s252
          %s254 = sshll.u32 [#allocation12], 4
          %s255 = int_to_ptr.vmem [resolvable:$true] %s254
          %260 = dma.hbm_to_vmem [thread:$0]  %s4, 2048, %s255, [#allocation11], 128, 128, 8
        $region20: #{tpu_custom_call.1} parent=11 // pred_fallthru
          _
        // Predicated region
        $region21: #{tpu_custom_call.1} parent=11 // pred_check
          %p261 = pneg %p191
        $region22: #{tpu_custom_call.1} parent=11 // pred_check_branch
          %263 = sbr.rel (%p261) target = $region24
        $region23: #{tpu_custom_call.1} parent=11 // pred_region
          _
        $region24: #{tpu_custom_call.1} parent=11 // pred_fallthru
          _
      $region12: #{tpu_custom_call.1} parent=5 // pred_fallthru
        _
      %p264 = scmp.lt.s32.totalorder %s20, 2
      // Predicated region
      $region25: #{tpu_custom_call.1} parent=5 // pred_check
        %p265 = pneg %p264
      $region26: #{tpu_custom_call.1} parent=5 // pred_check_branch
        %267 = sbr.rel (%p265) target = $region28
      $region27: #{tpu_custom_call.1} parent=5 // pred_region
        // Predicated region
        $region29: #{tpu_custom_call.1} parent=27 // pred_check
          %p268 = pneg %p63
        $region30: #{tpu_custom_call.1} parent=27 // pred_check_branch
          %270 = sbr.rel (%p268) target = $region32
        $region31: #{tpu_custom_call.1} parent=27 // pred_region
          %s271 = sand.u32 %s53, 1
          %s272 = scalar_lea.sflag [#allocation5], %s271
          %s273 = sand.u32 %s53, 1
          %s274 = smul.addr %s273, 8
          %s275 = scalar_lea.vmem [#allocation4], %s274
          %s276 = smul.u32 2, %s27
          %s278 = ssub.s32 128, 128
          %279 = vsyncadd %s272, %s278
          %s280 = sadd.s32 %s29, %s276
          %s281 = smul.addr %s28, 2
          %s282 = sadd.s32 %s280, %s281
          %s283 = smul.addr %s282, 64
          %s284 = scalar_lea.hbm %s0, %s283
          %s285 = sshll.u32 %s275, 4
          %s286 = int_to_ptr.vmem [resolvable:$true] %s285
          %291 = dma.hbm_to_vmem [thread:$0]  %s284, 128, %s286, %s272, 64, 64, 4
        $region32: #{tpu_custom_call.1} parent=27 // pred_fallthru
          _
        // Predicated region
        $region33: #{tpu_custom_call.1} parent=27 // pred_check
          %p292 = pneg %p91
        $region34: #{tpu_custom_call.1} parent=27 // pred_check_branch
          %294 = sbr.rel (%p292) target = $region36
        $region35: #{tpu_custom_call.1} parent=27 // pred_region
          %s295 = sand.u32 %s20, 1
          %s296 = scalar_lea.sflag [#allocation8], %s295
          %s297 = sand.u32 %s81, 1
          %s298 = smul.addr %s297, 16
          %s299 = scalar_lea.vmem [#allocation7], %s298
          %s300 = smul.u32 2, %s29
          %s302 = ssub.s32 256, 256
          %303 = vsyncadd %s296, %s302
          %s304 = smul.addr %s28, 2
          %s305 = sadd.s32 %s300, %s304
          %s306 = smul.addr %s305, 128
          %s307 = scalar_lea.hbm %s1, %s306
          %s308 = sshll.u32 %s299, 4
          %s309 = int_to_ptr.vmem [resolvable:$true] %s308
          %314 = dma.hbm_to_vmem [thread:$0]  %s307, 256, %s309, %s296, 128, 128, 8
        $region36: #{tpu_custom_call.1} parent=27 // pred_fallthru
          _
        // Predicated region
        $region37: #{tpu_custom_call.1} parent=27 // pred_check
          %p315 = pneg %p117
        $region38: #{tpu_custom_call.1} parent=27 // pred_check_branch
          %317 = sbr.rel (%p315) target = $region40
        $region39: #{tpu_custom_call.1} parent=27 // pred_region
          %s318 = sand.u32 %s20, 1
          %s319 = scalar_lea.sflag [#allocation8], %s318
          %s320 = sand.u32 %s107, 1
          %s321 = smul.addr %s320, 128
          %s322 = scalar_lea.vmem [#allocation9], %s321
          %s324 = ssub.s32 2048, 2048
          %325 = vsyncadd %s319, %s324
          %s326 = smul.addr %s28, 16
          %s327 = smul.addr %s326, 128
          %s328 = scalar_lea.hbm %s2, %s327
          %s329 = sshll.u32 %s322, 4
          %s330 = int_to_ptr.vmem [resolvable:$true] %s329
          %335 = dma.hbm_to_vmem [thread:$0]  %s328, 2048, %s330, %s319, 128, 128, 8
        $region40: #{tpu_custom_call.1} parent=27 // pred_fallthru
          _
      $region28: #{tpu_custom_call.1} parent=5 // pred_fallthru
        _
      %p336 = scmp.le.s32.totalorder 1, %s20
      %p337 = scmp.lt.s32.totalorder %s20, 3
      %p338 = pnand %p336, %p337
      %p339 = pneg %p338
      // Predicated region
      $region41: #{tpu_custom_call.1} parent=5 // pred_check
        _
      $region42: #{tpu_custom_call.1} parent=5 // pred_check_branch
        %341 = sbr.rel (%p338) target = $region44
      $region43: #{tpu_custom_call.1} parent=5 // pred_region
        %s342 = ssub.s32 %s20, 1
        %s343 = sand.u32 %s56, 1
        %s344 = scalar_lea.sflag [#allocation5], %s343
        %s345 = sand.u32 %s56, 1
        %s346 = smul.addr %s345, 8
        %s347 = scalar_lea.vmem [#allocation4], %s346
        // Predicated region
        $region45: #{tpu_custom_call.1} parent=43 // pred_check
          %p348 = pneg %p69
        $region46: #{tpu_custom_call.1} parent=43 // pred_check_branch
          %350 = sbr.rel (%p348) target = $region48
        $region47: #{tpu_custom_call.1} parent=43 // pred_region
          %351 = dma.done %s344, 128
        $region48: #{tpu_custom_call.1} parent=43 // pred_fallthru
          _
        %s352 = sand.u32 %s25, 1
        %s353 = scalar_lea.sflag [#allocation8], %s352
        %s354 = sand.u32 %s84, 1
        %s355 = smul.addr %s354, 16
        %s356 = scalar_lea.vmem [#allocation7], %s355
        // Predicated region
        $region49: #{tpu_custom_call.1} parent=43 // pred_check
          %p357 = pneg %p97
        $region50: #{tpu_custom_call.1} parent=43 // pred_check_branch
          %359 = sbr.rel (%p357) target = $region52
        $region51: #{tpu_custom_call.1} parent=43 // pred_region
          %360 = dma.done %s353, 256
        $region52: #{tpu_custom_call.1} parent=43 // pred_fallthru
          _
        %s361 = sand.u32 %s25, 1
        %s362 = scalar_lea.sflag [#allocation8], %s361
        %s363 = sand.u32 %s110, 1
        %s364 = smul.addr %s363, 128
        %s365 = scalar_lea.vmem [#allocation9], %s364
        // Predicated region
        $region53: #{tpu_custom_call.1} parent=43 // pred_check
          %p366 = pneg %p123
        $region54: #{tpu_custom_call.1} parent=43 // pred_check_branch
          %368 = sbr.rel (%p366) target = $region56
        $region55: #{tpu_custom_call.1} parent=43 // pred_region
          %369 = dma.done %s362, 2048
        $region56: #{tpu_custom_call.1} parent=43 // pred_fallthru
          _
        // Predicated region
        $region57: #{tpu_custom_call.1} parent=43 // pred_check
          %p370 = pneg %p149
        $region58: #{tpu_custom_call.1} parent=43 // pred_check_branch
          %372 = sbr.rel (%p370) target = $region60
        $region59: #{tpu_custom_call.1} parent=43 // pred_region
          %373 = dma.done [#allocation11], 256
        $region60: #{tpu_custom_call.1} parent=43 // pred_fallthru
          _
        // Predicated region
        $region61: #{tpu_custom_call.1} parent=43 // pred_check
          %p374 = pneg %p170
        $region62: #{tpu_custom_call.1} parent=43 // pred_check_branch
          %376 = sbr.rel (%p374) target = $region64
        $region63: #{tpu_custom_call.1} parent=43 // pred_region
          %377 = dma.done [#allocation11], 2048
        $region64: #{tpu_custom_call.1} parent=43 // pred_fallthru
          _
        %s378 = sand.u32 %s56, 1
        %s379 = scalar_lea.sflag [#allocation5], %s378
        %s380 = sand.u32 %s56, 1
        %s381 = smul.addr %s380, 8
        %s382 = scalar_lea.vmem [#allocation4], %s381
        %p383 = pneg %p69
        %p384 = pneg %p66
        %s385 = sand.u32 %s25, 1
        %s386 = scalar_lea.sflag [#allocation8], %s385
        %s387 = sand.u32 %s84, 1
        %s388 = smul.addr %s387, 16
        %s389 = scalar_lea.vmem [#allocation7], %s388
        %p390 = pneg %p97
        %p391 = pneg %p94
        %s392 = sand.u32 %s25, 1
        %s393 = scalar_lea.sflag [#allocation8], %s392
        %s394 = sand.u32 %s110, 1
        %s395 = smul.addr %s394, 128
        %s396 = scalar_lea.vmem [#allocation9], %s395
        %p397 = pneg %p123
        %p398 = pneg %p120
        %p399 = pneg %p149
        %p400 = pneg %p146
        %p401 = pneg %p170
        %p402 = pneg %p167
        %p403 = pneg %p191
        %p404 = pneg %p188
        %p405 = pneg %p217
        %p406 = pneg %p214
        %s407 = smul.u32 2, %s30
        %s408 = smul.u32 2, %s32
        %s409 = smul.u32 2, %s30
        %s410 = smul.u32 2, %s30
        %p411 = scmp.eq.s32.totalorder %s31, 0
        %p412 = scmp.eq.s32.totalorder %s32, 0
        %p413 = pnand %p411, %p412
        %p414 = pneg %p413
        // Predicated region
        $region65: #{tpu_custom_call.1} parent=43 // pred_check
          _
        $region66: #{tpu_custom_call.1} parent=43 // pred_check_branch
          %416 = sbr.rel (%p413) target = $region68
        $region67: #{tpu_custom_call.1} parent=43 // pred_region
          %v417 = vld [vmem:[#allocation10] sm:$0xff]
          %v418 = vld [vmem:[#allocation10 + $0x8] sm:$0xff]
          %v419 = vld [vmem:[#allocation12] sm:$0xff]
          %v420 = vld [vmem:[#allocation12 + $0x8] sm:$0xff]
          %v421 = vld [vmem:[#allocation12 + $0x10] sm:$0xff]
          %v422 = vld [vmem:[#allocation12 + $0x18] sm:$0xff]
          %v423 = vld [vmem:[#allocation12 + $0x20] sm:$0xff]
          %v424 = vld [vmem:[#allocation12 + $0x28] sm:$0xff]
          %v425 = vld [vmem:[#allocation12 + $0x30] sm:$0xff]
          %v426 = vld [vmem:[#allocation12 + $0x38] sm:$0xff]
          %v427 = vld [vmem:[#allocation12 + $0x40] sm:$0xff]
          %v428 = vld [vmem:[#allocation12 + $0x48] sm:$0xff]
          %v429 = vld [vmem:[#allocation12 + $0x50] sm:$0xff]
          %v430 = vld [vmem:[#allocation12 + $0x58] sm:$0xff]
          %v431 = vld [vmem:[#allocation12 + $0x60] sm:$0xff]
          %v432 = vld [vmem:[#allocation12 + $0x68] sm:$0xff]
          %v433 = vld [vmem:[#allocation12 + $0x70] sm:$0xff]
          %v434 = vld [vmem:[#allocation12 + $0x78] sm:$0xff]
          %v435 = vld [vmem:[%s5] sm:$0x1]
          %v437 = vlaneseq
          %v438 = vshrl.u32 %v437, 7
          %v439 = vsub.s32 0, %v438
          %v440 = vrot.slane %v435, %v439
          %442 = vmatprep.subr.mxu0 0.0
          %443 = vmatpush1.msra.mxu0 %v419
          %444 = vmatprep.subr.mxu0 0.0
          %445 = vmatpush1.msra.mxu0 %v420
          %446 = vmatprep.subr.mxu0 0.0
          %447 = vmatpush1.msra.mxu0 %v421
          %448 = vmatprep.subr.mxu0 0.0
          %449 = vmatpush1.msra.mxu0 %v422
          %450 = vmatprep.subr.mxu0 0.0
          %451 = vmatpush1.msra.mxu0 %v423
          %452 = vmatprep.subr.mxu0 0.0
          %453 = vmatpush1.msra.mxu0 %v424
          %454 = vmatprep.subr.mxu0 0.0
          %455 = vmatpush1.msra.mxu0 %v425
          %456 = vmatprep.subr.mxu0 0.0
          %457 = vmatpush1.msra.mxu0 %v426
          %458 = vmatprep.subr.mxu0 0.0
          %459 = vmatpush1.msra.mxu0 %v427
          %460 = vmatprep.subr.mxu0 0.0
          %461 = vmatpush1.msra.mxu0 %v428
          %462 = vmatprep.subr.mxu0 0.0
          %463 = vmatpush1.msra.mxu0 %v429
          %464 = vmatprep.subr.mxu0 0.0
          %465 = vmatpush1.msra.mxu0 %v430
          %466 = vmatprep.subr.mxu0 0.0
          %467 = vmatpush1.msra.mxu0 %v431
          %468 = vmatprep.subr.mxu0 0.0
          %469 = vmatpush1.msra.mxu0 %v432
          %470 = vmatprep.subr.mxu0 0.0
          %471 = vmatpush1.msra.mxu0 %v433
          %472 = vmatprep.subr.mxu0 0.0
          %473 = vmatpush1.msra.mxu0 %v434
          %474 = vmatprep.subr.mxu0 0.0
          %475 = vmatpush1.msra.mxu0 0.0
          %476 = vmatprep.subr.mxu0 0.0
          %477 = vmatpush1.msra.mxu0 0.0
          %478 = vmatprep.subr.mxu0 0.0
          %479 = vmatpush1.msra.mxu0 0.0
          %480 = vmatprep.subr.mxu0 0.0
          %481 = vmatpush1.msra.mxu0 0.0
          %482 = vmatprep.subr.mxu0 0.0
          %483 = vmatpush1.msra.mxu0 0.0
          %484 = vmatprep.subr.mxu0 0.0
          %485 = vmatpush1.msra.mxu0 0.0
          %486 = vmatprep.subr.mxu0 0.0
          %487 = vmatpush1.msra.mxu0 0.0
          %488 = vmatprep.subr.mxu0 0.0
          %489 = vmatpush1.msra.mxu0 0.0
          %490 = vmatprep.subr.mxu0 0.0
          %491 = vmatpush1.msra.mxu0 0.0
          %492 = vmatprep.subr.mxu0 0.0
          %493 = vmatpush1.msra.mxu0 0.0
          %494 = vmatprep.subr.mxu0 0.0
          %495 = vmatpush1.msra.mxu0 0.0
          %496 = vmatprep.subr.mxu0 0.0
          %497 = vmatpush1.msra.mxu0 0.0
          %498 = vmatprep.subr.mxu0 0.0
          %499 = vmatpush1.msra.mxu0 0.0
          %500 = vmatprep.subr.mxu0 0.0
          %501 = vmatpush1.msra.mxu0 0.0
          %502 = vmatprep.subr.mxu0 0.0
          %503 = vmatpush1.msra.mxu0 0.0
          %504 = vmatprep.subr.mxu0 0.0
          %505 = vmatpush1.msra.mxu0 0.0
          %506 = vmatprep.mubr.f32.mxu0 0.0
          %507 = vmatmul.mubr.f32.gmra.mrb[0].mxu0 %v417
          %v508 = vpop.f32.mrb[0].mxu0
          %v509 = vadd.f32 %v440, %v508
          %v510 = vpop.f32.mrb[0].mxu0
          %511 = vmatprep.mubr.f32.mxu0 0.0
          %512 = vmatmul.mubr.f32.gmra.mrb[0].mxu0 %v418
          %v513 = vpop.f32.mrb[0].mxu0
          %v514 = vadd.f32 %v440, %v513
          %v515 = vpop.f32.mrb[0].mxu0
          %516 = vdwg.mxu0
          %517 = vst [vmem:[#allocation3] sm:$0xff] %v509
          %518 = vst [vmem:[#allocation3 + $0x8] sm:$0xff] %v514
        $region68: #{tpu_custom_call.1} parent=43 // pred_fallthru
          _
        // Predicated region
        $region69: #{tpu_custom_call.1} parent=43 // pred_check
          %p519 = pneg %p412
        $region70: #{tpu_custom_call.1} parent=43 // pred_check_branch
          %521 = sbr.rel (%p519) target = $region72
        $region71: #{tpu_custom_call.1} parent=43 // pred_region
          %522 = vst [vmem:[#allocation2] sm:$0xff] -1e+30
          %523 = vst [vmem:[#allocation2 + $0x8] sm:$0xff] -1e+30
        $region72: #{tpu_custom_call.1} parent=43 // pred_fallthru
          _
        %v524 = vld [vmem:[%s347] sm:$0xf]
        %v525 = vld [vmem:[%s347 + $0x4] sm:$0xf]
        %v526 = vunpack.c.l.bf16 %v524
        %v527 = vunpack.c.l.bf16 %v525
        %v528 = vld [vmem:[%s356] sm:$0xff]
        %v529 = vld [vmem:[%s356 + $0x8] sm:$0xff]
        %v530 = vld [vmem:[#allocation2] sm:$0xff]
        %v531 = vld [vmem:[#allocation2 + $0x8] sm:$0xff]
        %vm532 = vcmp.gt.f32.partialorder %v526, 0.0
        %vm533 = vcmp.gt.f32.partialorder %v527, 0.0
        %v534 = vsel %vm532, 1, 0
        %v535 = vsel %vm533, 1, 0
        %536 = vset.pattern.permute.xlu0 0
        %537 = vperm.xlu0 %536, %v534
        %v538 = vpop.permute.xlu0 %537
        %539 = vset.pattern.permute.xlu0 0
        %540 = vperm.xlu0 %539, %v535
        %v541 = vpop.permute.xlu0 %540
        %vm542 = vcmp.eq.s32.totalorder %v538, 1
        %vm543 = vcmp.eq.s32.totalorder %v541, 1
        %v544 = vlaneseq
        %v545 = vshrl.u32 %v544, 7
        %v546 = vsub.s32 0, %v545
        %v547 = vrot.slane %v528, %v546
        %v548 = vsel %vm542, %v547, -1e+30
        %v549 = vsel %vm543, %v547, -1e+30
        %v550 = vmax.f32 %v530, %v548
        %v551 = vmax.f32 %v531, %v549
        %552 = vset.pattern.permute.xlu0 1
        %553 = vperm.xlu0 %552, %v534
        %v554 = vpop.permute.xlu0 %553
        %555 = vset.pattern.permute.xlu0 1
        %556 = vperm.xlu0 %555, %v535
        %v557 = vpop.permute.xlu0 %556
        %vm558 = vcmp.eq.s32.totalorder %v554, 1
        %vm559 = vcmp.eq.s32.totalorder %v557, 1
        %v560 = vlaneseq
        %v561 = vshrl.u32 %v560, 7
        %v562 = vsub.s32 1, %v561
        %v563 = vrot.slane %v528, %v562
        %v564 = vsel %vm558, %v563, -1e+30
        %v565 = vsel %vm559, %v563, -1e+30
        %v566 = vmax.f32 %v550, %v564
        %v567 = vmax.f32 %v551, %v565
        %568 = vset.pattern.permute.xlu0 2
        %569 = vperm.xlu0 %568, %v534
        %v570 = vpop.permute.xlu0 %569
        %571 = vset.pattern.permute.xlu0 2
        %572 = vperm.xlu0 %571, %v535
        %v573 = vpop.permute.xlu0 %572
        %vm574 = vcmp.eq.s32.totalorder %v570, 1
        %vm575 = vcmp.eq.s32.totalorder %v573, 1
        %v576 = vlaneseq
        %v577 = vshrl.u32 %v576, 7
        %v578 = vsub.s32 2, %v577
        %v579 = vrot.slane %v528, %v578
        %v580 = vsel %vm574, %v579, -1e+30
        %v581 = vsel %vm575, %v579, -1e+30
        %v582 = vmax.f32 %v566, %v580
        %v583 = vmax.f32 %v567, %v581
        %584 = vset.pattern.permute.xlu0 3
        %585 = vperm.xlu0 %584, %v534
        %v586 = vpop.permute.xlu0 %585
        %587 = vset.pattern.permute.xlu0 3
        %588 = vperm.xlu0 %587, %v535
        %v589 = vpop.permute.xlu0 %588
        %vm590 = vcmp.eq.s32.totalorder %v586, 1
        %vm591 = vcmp.eq.s32.totalorder %v589, 1
        %v592 = vlaneseq
        %v593 = vshrl.u32 %v592, 7
        %v594 = vsub.s32 3, %v593
        %v595 = vrot.slane %v528, %v594
        %v596 = vsel %vm590, %v595, -1e+30
        %v597 = vsel %vm591, %v595, -1e+30
        %v598 = vmax.f32 %v582, %v596
        %v599 = vmax.f32 %v583, %v597
        %600 = vset.pattern.permute.xlu0 4
        %601 = vperm.xlu0 %600, %v534
        %v602 = vpop.permute.xlu0 %601
        %603 = vset.pattern.permute.xlu0 4
        %604 = vperm.xlu0 %603, %v535
        %v605 = vpop.permute.xlu0 %604
        %vm606 = vcmp.eq.s32.totalorder %v602, 1
        %vm607 = vcmp.eq.s32.totalorder %v605, 1
        %v608 = vlaneseq
        %v609 = vshrl.u32 %v608, 7
        %v610 = vsub.s32 4, %v609
        %v611 = vrot.slane %v528, %v610
        %v612 = vsel %vm606, %v611, -1e+30
        %v613 = vsel %vm607, %v611, -1e+30
        %v614 = vmax.f32 %v598, %v612
        %v615 = vmax.f32 %v599, %v613
        %616 = vset.pattern.permute.xlu0 5
        %617 = vperm.xlu0 %616, %v534
        %v618 = vpop.permute.xlu0 %617
        %619 = vset.pattern.permute.xlu0 5
        %620 = vperm.xlu0 %619, %v535
        %v621 = vpop.permute.xlu0 %620
        %vm622 = vcmp.eq.s32.totalorder %v618, 1
        %vm623 = vcmp.eq.s32.totalorder %v621, 1
        %v624 = vlaneseq
        %v625 = vshrl.u32 %v624, 7
        %v626 = vsub.s32 5, %v625
        %v627 = vrot.slane %v528, %v626
        %v628 = vsel %vm622, %v627, -1e+30
        %v629 = vsel %vm623, %v627, -1e+30
        %v630 = vmax.f32 %v614, %v628
        %v631 = vmax.f32 %v615, %v629
        %632 = vset.pattern.permute.xlu0 6
        %633 = vperm.xlu0 %632, %v534
        %v634 = vpop.permute.xlu0 %633
        %635 = vset.pattern.permute.xlu0 6
        %636 = vperm.xlu0 %635, %v535
        %v637 = vpop.permute.xlu0 %636
        %vm638 = vcmp.eq.s32.totalorder %v634, 1
        %vm639 = vcmp.eq.s32.totalorder %v637, 1
        %v640 = vlaneseq
        %v641 = vshrl.u32 %v640, 7
        %v642 = vsub.s32 6, %v641
        %v643 = vrot.slane %v528, %v642
        %v644 = vsel %vm638, %v643, -1e+30
        %v645 = vsel %vm639, %v643, -1e+30
        %v646 = vmax.f32 %v630, %v644
        %v647 = vmax.f32 %v631, %v645
        %648 = vset.pattern.permute.xlu0 7
        %649 = vperm.xlu0 %648, %v534
        %v650 = vpop.permute.xlu0 %649
        %651 = vset.pattern.permute.xlu0 7
        %652 = vperm.xlu0 %651, %v535
        %v653 = vpop.permute.xlu0 %652
        %vm654 = vcmp.eq.s32.totalorder %v650, 1
        %vm655 = vcmp.eq.s32.totalorder %v653, 1
        %v656 = vlaneseq
        %v657 = vshrl.u32 %v656, 7
        %v658 = vsub.s32 7, %v657
        %v659 = vrot.slane %v528, %v658
        %v660 = vsel %vm654, %v659, -1e+30
        %v661 = vsel %vm655, %v659, -1e+30
        %v662 = vmax.f32 %v646, %v660
        %v663 = vmax.f32 %v647, %v661
        %664 = vset.pattern.permute.xlu0 8
        %665 = vperm.xlu0 %664, %v534
        %v666 = vpop.permute.xlu0 %665
        %667 = vset.pattern.permute.xlu0 8
        %668 = vperm.xlu0 %667, %v535
        %v669 = vpop.permute.xlu0 %668
        %vm670 = vcmp.eq.s32.totalorder %v666, 1
        %vm671 = vcmp.eq.s32.totalorder %v669, 1
        %v672 = vlaneseq
        %v673 = vshrl.u32 %v672, 7
        %v674 = vsub.s32 0, %v673
        %v675 = vrot.slane %v529, %v674
        %v676 = vsel %vm670, %v675, -1e+30
        %v677 = vsel %vm671, %v675, -1e+30
        %v678 = vmax.f32 %v662, %v676
        %v679 = vmax.f32 %v663, %v677
        %680 = vset.pattern.permute.xlu0 9
        %681 = vperm.xlu0 %680, %v534
        %v682 = vpop.permute.xlu0 %681
        %683 = vset.pattern.permute.xlu0 9
        %684 = vperm.xlu0 %683, %v535
        %v685 = vpop.permute.xlu0 %684
        %vm686 = vcmp.eq.s32.totalorder %v682, 1
        %vm687 = vcmp.eq.s32.totalorder %v685, 1
        %v688 = vlaneseq
        %v689 = vshrl.u32 %v688, 7
        %v690 = vsub.s32 1, %v689
        %v691 = vrot.slane %v529, %v690
        %v692 = vsel %vm686, %v691, -1e+30
        %v693 = vsel %vm687, %v691, -1e+30
        %v694 = vmax.f32 %v678, %v692
        %v695 = vmax.f32 %v679, %v693
        %696 = vset.pattern.permute.xlu0 10
        %697 = vperm.xlu0 %696, %v534
        %v698 = vpop.permute.xlu0 %697
        %699 = vset.pattern.permute.xlu0 10
        %700 = vperm.xlu0 %699, %v535
        %v701 = vpop.permute.xlu0 %700
        %vm702 = vcmp.eq.s32.totalorder %v698, 1
        %vm703 = vcmp.eq.s32.totalorder %v701, 1
        %v704 = vlaneseq
        %v705 = vshrl.u32 %v704, 7
        %v706 = vsub.s32 2, %v705
        %v707 = vrot.slane %v529, %v706
        %v708 = vsel %vm702, %v707, -1e+30
        %v709 = vsel %vm703, %v707, -1e+30
        %v710 = vmax.f32 %v694, %v708
        %v711 = vmax.f32 %v695, %v709
        %712 = vset.pattern.permute.xlu0 11
        %713 = vperm.xlu0 %712, %v534
        %v714 = vpop.permute.xlu0 %713
        %715 = vset.pattern.permute.xlu0 11
        %716 = vperm.xlu0 %715, %v535
        %v717 = vpop.permute.xlu0 %716
        %vm718 = vcmp.eq.s32.totalorder %v714, 1
        %vm719 = vcmp.eq.s32.totalorder %v717, 1
        %v720 = vlaneseq
        %v721 = vshrl.u32 %v720, 7
        %v722 = vsub.s32 3, %v721
        %v723 = vrot.slane %v529, %v722
        %v724 = vsel %vm718, %v723, -1e+30
        %v725 = vsel %vm719, %v723, -1e+30
        %v726 = vmax.f32 %v710, %v724
        %v727 = vmax.f32 %v711, %v725
        %728 = vset.pattern.permute.xlu0 12
        %729 = vperm.xlu0 %728, %v534
        %v730 = vpop.permute.xlu0 %729
        %731 = vset.pattern.permute.xlu0 12
        %732 = vperm.xlu0 %731, %v535
        %v733 = vpop.permute.xlu0 %732
        %vm734 = vcmp.eq.s32.totalorder %v730, 1
        %vm735 = vcmp.eq.s32.totalorder %v733, 1
        %v736 = vlaneseq
        %v737 = vshrl.u32 %v736, 7
        %v738 = vsub.s32 4, %v737
        %v739 = vrot.slane %v529, %v738
        %v740 = vsel %vm734, %v739, -1e+30
        %v741 = vsel %vm735, %v739, -1e+30
        %v742 = vmax.f32 %v726, %v740
        %v743 = vmax.f32 %v727, %v741
        %744 = vset.pattern.permute.xlu0 13
        %745 = vperm.xlu0 %744, %v534
        %v746 = vpop.permute.xlu0 %745
        %747 = vset.pattern.permute.xlu0 13
        %748 = vperm.xlu0 %747, %v535
        %v749 = vpop.permute.xlu0 %748
        %vm750 = vcmp.eq.s32.totalorder %v746, 1
        %vm751 = vcmp.eq.s32.totalorder %v749, 1
        %v752 = vlaneseq
        %v753 = vshrl.u32 %v752, 7
        %v754 = vsub.s32 5, %v753
        %v755 = vrot.slane %v529, %v754
        %v756 = vsel %vm750, %v755, -1e+30
        %v757 = vsel %vm751, %v755, -1e+30
        %v758 = vmax.f32 %v742, %v756
        %v759 = vmax.f32 %v743, %v757
        %760 = vset.pattern.permute.xlu0 14
        %761 = vperm.xlu0 %760, %v534
        %v762 = vpop.permute.xlu0 %761
        %763 = vset.pattern.permute.xlu0 14
        %764 = vperm.xlu0 %763, %v535
        %v765 = vpop.permute.xlu0 %764
        %vm766 = vcmp.eq.s32.totalorder %v762, 1
        %vm767 = vcmp.eq.s32.totalorder %v765, 1
        %v768 = vlaneseq
        %v769 = vshrl.u32 %v768, 7
        %v770 = vsub.s32 6, %v769
        %v771 = vrot.slane %v529, %v770
        %v772 = vsel %vm766, %v771, -1e+30
        %v773 = vsel %vm767, %v771, -1e+30
        %v774 = vmax.f32 %v758, %v772
        %v775 = vmax.f32 %v759, %v773
        %776 = vset.pattern.permute.xlu0 15
        %777 = vperm.xlu0 %776, %v534
        %v778 = vpop.permute.xlu0 %777
        %779 = vset.pattern.permute.xlu0 15
        %780 = vperm.xlu0 %779, %v535
        %v781 = vpop.permute.xlu0 %780
        %vm782 = vcmp.eq.s32.totalorder %v778, 1
        %vm783 = vcmp.eq.s32.totalorder %v781, 1
        %v784 = vlaneseq
        %v785 = vshrl.u32 %v784, 7
        %v786 = vsub.s32 7, %v785
        %v787 = vrot.slane %v529, %v786
        %v788 = vsel %vm782, %v787, -1e+30
        %v789 = vsel %vm783, %v787, -1e+30
        %v790 = vmax.f32 %v774, %v788
        %v791 = vmax.f32 %v775, %v789
        %792 = vst [vmem:[#allocation2] sm:$0xff] %v790
        %793 = vst [vmem:[#allocation2 + $0x8] sm:$0xff] %v791
        // Predicated region
        $region73: #{tpu_custom_call.1} parent=43 // pred_check
          %p794 = pneg %p412
        $region74: #{tpu_custom_call.1} parent=43 // pred_check_branch
          %796 = sbr.rel (%p794) target = $region76
        $region75: #{tpu_custom_call.1} parent=43 // pred_region
          %v797 = vld [vmem:[#allocation2] sm:$0xff]
          %v798 = vld [vmem:[#allocation2 + $0x8] sm:$0xff]
          %vm799 = vcmp.gt.f32.partialorder %v797, -5e+29
          %vm800 = vcmp.gt.f32.partialorder %v798, -5e+29
          %v801 = vsel %vm799, %v797, 0.0
          %v802 = vsel %vm800, %v798, 0.0
          %v803 = vld [vmem:[#allocation3] sm:$0xff]
          %v804 = vld [vmem:[#allocation3 + $0x8] sm:$0xff]
          %v805 = vld [vmem:[%s365] sm:$0xff]
          %v806 = vld [vmem:[%s365 + $0x8] sm:$0xff]
          %v807 = vld [vmem:[%s365 + $0x10] sm:$0xff]
          %v808 = vld [vmem:[%s365 + $0x18] sm:$0xff]
          %v809 = vld [vmem:[%s365 + $0x20] sm:$0xff]
          %v810 = vld [vmem:[%s365 + $0x28] sm:$0xff]
          %v811 = vld [vmem:[%s365 + $0x30] sm:$0xff]
          %v812 = vld [vmem:[%s365 + $0x38] sm:$0xff]
          %v813 = vld [vmem:[%s365 + $0x40] sm:$0xff]
          %v814 = vld [vmem:[%s365 + $0x48] sm:$0xff]
          %v815 = vld [vmem:[%s365 + $0x50] sm:$0xff]
          %v816 = vld [vmem:[%s365 + $0x58] sm:$0xff]
          %v817 = vld [vmem:[%s365 + $0x60] sm:$0xff]
          %v818 = vld [vmem:[%s365 + $0x68] sm:$0xff]
          %v819 = vld [vmem:[%s365 + $0x70] sm:$0xff]
          %v820 = vld [vmem:[%s365 + $0x78] sm:$0xff]
          %821 = vmatprep.subr.mxu0 0.0
          %822 = vmatpush1.msra.mxu0 %v805
          %823 = vmatprep.subr.mxu0 0.0
          %824 = vmatpush1.msra.mxu0 %v806
          %825 = vmatprep.subr.mxu0 0.0
          %826 = vmatpush1.msra.mxu0 %v807
          %827 = vmatprep.subr.mxu0 0.0
          %828 = vmatpush1.msra.mxu0 %v808
          %829 = vmatprep.subr.mxu0 0.0
          %830 = vmatpush1.msra.mxu0 %v809
          %831 = vmatprep.subr.mxu0 0.0
          %832 = vmatpush1.msra.mxu0 %v810
          %833 = vmatprep.subr.mxu0 0.0
          %834 = vmatpush1.msra.mxu0 %v811
          %835 = vmatprep.subr.mxu0 0.0
          %836 = vmatpush1.msra.mxu0 %v812
          %837 = vmatprep.subr.mxu0 0.0
          %838 = vmatpush1.msra.mxu0 %v813
          %839 = vmatprep.subr.mxu0 0.0
          %840 = vmatpush1.msra.mxu0 %v814
          %841 = vmatprep.subr.mxu0 0.0
          %842 = vmatpush1.msra.mxu0 %v815
          %843 = vmatprep.subr.mxu0 0.0
          %844 = vmatpush1.msra.mxu0 %v816
          %845 = vmatprep.subr.mxu0 0.0
          %846 = vmatpush1.msra.mxu0 %v817
          %847 = vmatprep.subr.mxu0 0.0
          %848 = vmatpush1.msra.mxu0 %v818
          %849 = vmatprep.subr.mxu0 0.0
          %850 = vmatpush1.msra.mxu0 %v819
          %851 = vmatprep.subr.mxu0 0.0
          %852 = vmatpush1.msra.mxu0 %v820
          %853 = vmatprep.subr.mxu0 0.0
          %854 = vmatpush1.msra.mxu0 0.0
          %855 = vmatprep.subr.mxu0 0.0
          %856 = vmatpush1.msra.mxu0 0.0
          %857 = vmatprep.subr.mxu0 0.0
          %858 = vmatpush1.msra.mxu0 0.0
          %859 = vmatprep.subr.mxu0 0.0
          %860 = vmatpush1.msra.mxu0 0.0
          %861 = vmatprep.subr.mxu0 0.0
          %862 = vmatpush1.msra.mxu0 0.0
          %863 = vmatprep.subr.mxu0 0.0
          %864 = vmatpush1.msra.mxu0 0.0
          %865 = vmatprep.subr.mxu0 0.0
          %866 = vmatpush1.msra.mxu0 0.0
          %867 = vmatprep.subr.mxu0 0.0
          %868 = vmatpush1.msra.mxu0 0.0
          %869 = vmatprep.subr.mxu0 0.0
          %870 = vmatpush1.msra.mxu0 0.0
          %871 = vmatprep.subr.mxu0 0.0
          %872 = vmatpush1.msra.mxu0 0.0
          %873 = vmatprep.subr.mxu0 0.0
          %874 = vmatpush1.msra.mxu0 0.0
          %875 = vmatprep.subr.mxu0 0.0
          %876 = vmatpush1.msra.mxu0 0.0
          %877 = vmatprep.subr.mxu0 0.0
          %878 = vmatpush1.msra.mxu0 0.0
          %879 = vmatprep.subr.mxu0 0.0
          %880 = vmatpush1.msra.mxu0 0.0
          %881 = vmatprep.subr.mxu0 0.0
          %882 = vmatpush1.msra.mxu0 0.0
          %883 = vmatprep.subr.mxu0 0.0
          %884 = vmatpush1.msra.mxu0 0.0
          %885 = vmatprep.mubr.f32.mxu0 0.0
          %886 = vmatmul.mubr.f32.gmra.mrb[0].mxu0 %v801
          %v887 = vpop.f32.mrb[0].mxu0
          %v888 = vadd.f32 0.0, %v887
          %v889 = vpop.f32.mrb[0].mxu0
          %890 = vmatprep.mubr.f32.mxu0 0.0
          %891 = vmatmul.mubr.f32.gmra.mrb[0].mxu0 %v802
          %v892 = vpop.f32.mrb[0].mxu0
          %v893 = vadd.f32 0.0, %v892
          %v894 = vpop.f32.mrb[0].mxu0
          %895 = vdwg.mxu0
          %v896 = vadd.f32 %v803, %v888
          %v897 = vadd.f32 %v804, %v893
          %898 = vst [vmem:[#allocation3] sm:$0xff] %v896
          %899 = vst [vmem:[#allocation3 + $0x8] sm:$0xff] %v897
        $region76: #{tpu_custom_call.1} parent=43 // pred_fallthru
          _
        %p900 = scmp.eq.s32.totalorder %s31, 1
        %p901 = pnand %p900, %p412
        %p902 = pneg %p901
        // Predicated region
        $region77: #{tpu_custom_call.1} parent=43 // pred_check
          _
        $region78: #{tpu_custom_call.1} parent=43 // pred_check_branch
          %904 = sbr.rel (%p901) target = $region80
        $region79: #{tpu_custom_call.1} parent=43 // pred_region
          %v905 = vld [vmem:[#allocation3] sm:$0xff]
          %v906 = vld [vmem:[#allocation3 + $0x8] sm:$0xff]
          %907 = vst [vmem:[#allocation13] sm:$0xff] %v905
          %908 = vst [vmem:[#allocation13 + $0x8] sm:$0xff] %v906
        $region80: #{tpu_custom_call.1} parent=43 // pred_fallthru
          _
        // Predicated region
        $region81: #{tpu_custom_call.1} parent=43 // pred_check
          %p909 = pneg %p214
        $region82: #{tpu_custom_call.1} parent=43 // pred_check_branch
          %911 = sbr.rel (%p909) target = $region84
        $region83: #{tpu_custom_call.1} parent=43 // pred_region
          %s912 = smul.u32 2, %s30
          %s914 = ssub.s32 256, 256
          %915 = vsyncadd [#allocation6], %s914
          %s916 = smul.addr %s912, 128
          %s917 = scalar_lea.hbm %s6, %s916
          %s918 = sshll.u32 [#allocation13], 4
          %s919 = int_to_ptr.vmem [resolvable:$true] %s918
          %924 = dma.vmem_to_hbm [thread:$0]  %s919, 256, %s917, [#allocation6], 128, 128, 8
        $region84: #{tpu_custom_call.1} parent=43 // pred_fallthru
          _
        // Predicated region
        $region85: #{tpu_custom_call.1} parent=43 // pred_check
          %p925 = pneg %p214
        $region86: #{tpu_custom_call.1} parent=43 // pred_check_branch
          %927 = sbr.rel (%p925) target = $region88
        $region87: #{tpu_custom_call.1} parent=43 // pred_region
          %928 = dma.done [#allocation6], 256
        $region88: #{tpu_custom_call.1} parent=43 // pred_fallthru
          _
      $region44: #{tpu_custom_call.1} parent=5 // pred_fallthru
        _
      %p929 = scmp.le.s32.totalorder 2, %s20
      // Predicated region
      $region89: #{tpu_custom_call.1} parent=5 // pred_check
        %p930 = pneg %p929
      $region90: #{tpu_custom_call.1} parent=5 // pred_check_branch
        %932 = sbr.rel (%p930) target = $region92
      $region91: #{tpu_custom_call.1} parent=5 // pred_region
        %s933 = ssub.s32 %s20, 2
      $region92: #{tpu_custom_call.1} parent=5 // pred_fallthru
        _
    $region6: #{tpu_custom_call.1} parent=1 // loop_footer
      %s24 = sadd.s32 1, %s20
    $region7: #{tpu_custom_call.1} parent=1 // loop_footer_branch
      %19 = sbr.rel target = $region3
    $region8: #{tpu_custom_call.1} parent=1 // loop_exit
      _
    %934 = vsyncpa [#allocation5], 1
    %s935 = scalar_lea.sflag [#allocation5], 1
    %936 = vsyncpa %s935, 1
    %937 = vsyncpa [#allocation8], 1
    %s938 = scalar_lea.sflag [#allocation8], 1
    %939 = vsyncpa %s938, 1
    %940 = vsyncpa [#allocation11], 1
    %941 = vsyncpa [#allocation6], 1
    %s942 = scalar_lea.sflag [#allocation6], 1
    %943 = vsyncpa %s942, 1

</llo_original>
